<compile_context>
chip_gen: v7x
topology: tpu7x:2x2x1
jax: 0.10.0
libtpu: 0.0.40
codegen_flags: <defaults>
</compile_context>

<pallas_src>
import jax
import jax.numpy as jnp
from jax.experimental import pallas as pl
from jax.experimental.pallas import tpu as pltpu

_VMEM_LIMIT_BYTES = 32 * 1024 * 1024      # safe scoped-VMEM budget on v5e/v6e/v7x
_TARGET_X_TILE_BYTES = 2 * 1024 * 1024    # per pipeline buffer (x2 double-buffer)
_MAX_BLOCK_ROWS = 512                     # bound per-step batched-matmul work


# ---------------------------------------------------------------------------
# Kernels
# ---------------------------------------------------------------------------

def _attention_kernel_mxu(x_ref, w_ref, b_ref, out_ref):
    """x_ref: (TB,S,F), w_ref: (1,1,F), b_ref: (1,1,S), out_ref: (TB,1,F)."""
    x = x_ref[...].astype(jnp.float32)                          # (TB, S, F)
    w = w_ref[...].astype(jnp.float32)                          # (1, 1, F)
    b = b_ref[...].astype(jnp.float32)                          # (1, 1, S)

    tb, _, f = x.shape
    w_b = jnp.broadcast_to(w, (tb, 1, f))                       # (TB, 1, F)

    # eij = x @ weight  (contract F on the MXU) -> (TB, 1, S)
    e = jnp.einsum("bqd,bkd->bqk", w_b, x,
                   preferred_element_type=jnp.float32,
                   precision=jax.lax.Precision.HIGHEST)
    e = jnp.tanh(e + b)
    a = jnp.exp(e)
    # NOTE: PyTorch adds 1e-10 AFTER the division (to `a`, not the denominator).
    a = a / jnp.sum(a, axis=-1, keepdims=True) + 1e-10          # (TB, 1, S)

    # weighted sum over the step dim (batched matvec on the MXU) -> (TB, 1, F)
    out = jnp.einsum("bqk,bkd->bqd", a, x,
                     preferred_element_type=jnp.float32,
                     precision=jax.lax.Precision.HIGHEST)
    out_ref[...] = out.astype(out_ref.dtype)


def _attention_kernel_vpu(x_ref, w_ref, b_ref, out_ref):
    """Fallback (elementwise/VPU): x_ref (TB,S,F), w_ref (1,F), b_ref (1,S), out_ref (TB,F)."""
    x = x_ref[...].astype(jnp.float32)
    w = w_ref[...].astype(jnp.float32)
    b = b_ref[...].astype(jnp.float32)

    e = jnp.sum(x * w[None, :, :], axis=-1)                     # (TB, S)
    e = jnp.tanh(e + b)
    a = jnp.exp(e)
    a = a / jnp.sum(a, axis=1, keepdims=True) + 1e-10
    out = jnp.sum(x * a[:, :, None], axis=1)                    # (TB, F)
    out_ref[...] = out.astype(out_ref.dtype)


# ---------------------------------------------------------------------------
# Wrappers
# ---------------------------------------------------------------------------

def _choose_block_b(B, S, F, itemsize):
    rows = _TARGET_X_TILE_BYTES // max(1, S * F * itemsize)
    rows = int(max(1, min(rows, _MAX_BLOCK_ROWS)))
    if rows >= B:
        return B
    return max(8, (rows // 8) * 8)     # keep sublane-aligned block rows


def _cost_estimate(B, S, F, itemsize):
    return pl.CostEstimate(
        flops=4 * B * S * F,                 # two F/S contractions, 2 flops/MAC
        transcendentals=2 * B * S,           # tanh + exp per logit
        bytes_accessed=B * S * F * itemsize + B * F * itemsize + 4 * (F + S),
    )


def _compiler_params():
    return pltpu.CompilerParams(
        dimension_semantics=("parallel",),   # shard batch axis across TCs (v7x)
        vmem_limit_bytes=_VMEM_LIMIT_BYTES,
    )


def _attention_forward_mxu(x, weight, bias, block_b):
    B, S, F = x.shape
    w3 = weight.reshape(1, 1, F)
    b3 = bias.reshape(1, 1, S)
    out = pl.pallas_call(
        _attention_kernel_mxu,
        out_shape=jax.ShapeDtypeStruct((B, 1, F), x.dtype),
        grid=(pl.cdiv(B, block_b),),
        in_specs=[
            pl.BlockSpec((block_b, S, F), lambda i: (i, 0, 0)),
            pl.BlockSpec((1, 1, F), lambda i: (0, 0, 0)),
            pl.BlockSpec((1, 1, S), lambda i: (0, 0, 0)),
        ],
        out_specs=pl.BlockSpec((block_b, 1, F), lambda i: (i, 0, 0)),
        compiler_params=_compiler_params(),
        cost_estimate=_cost_estimate(B, S, F, x.dtype.itemsize),
    )(x, w3, b3)
    return out.reshape(B, F)                 # metadata-only reshape outside kernel


def _attention_forward_vpu(x, weight, bias, block_b):
    B, S, F = x.shape
    w2 = weight.reshape(1, F)
    b2 = bias.reshape(1, S)
    return pl.pallas_call(
        _attention_kernel_vpu,
        out_shape=jax.ShapeDtypeStruct((B, F), x.dtype),
        grid=(pl.cdiv(B, block_b),),
        in_specs=[
            pl.BlockSpec((block_b, S, F), lambda i: (i, 0, 0)),
            pl.BlockSpec((1, F), lambda i: (0, 0)),
            pl.BlockSpec((1, S), lambda i: (0, 0)),
        ],
        out_specs=pl.BlockSpec((block_b, F), lambda i: (i, 0)),
        compiler_params=_compiler_params(),
        cost_estimate=_cost_estimate(B, S, F, x.dtype.itemsize),
    )(x, w2, b2)


def attention_forward(x, weight, bias, *, block_b=None):
    """x: (B, S, F), weight: (F, 1), bias: (S,) -> (B, F)."""
    # TODO(synk): the optional `mask` argument of Attention.forward is not
    # implemented; this covers the mask=None path used in the reference module.
    B, S, F = x.shape
    if block_b is None:
        block_b = _choose_block_b(B, S, F, x.dtype.itemsize)
    try:
        return _attention_forward_mxu(x, weight, bias, block_b)
    except Exception:
        # Batched in-kernel dot_general unavailable on this Mosaic build —
        # fall back to the pure elementwise kernel (same math, same tiling).
        return _attention_forward_vpu(x, weight, bias, block_b)


def attention_reference(x, weight, bias):
    B, S, F = x.shape
    e = (x.reshape(-1, F) @ weight).reshape(B, S)
    e = e + bias[None, :]
    e = jnp.tanh(e)
    a = jnp.exp(e)
    a = a / jnp.sum(a, axis=1, keepdims=True) + 1e-10
    return jnp.sum(x * a[:, :, None], axis=1)


if __name__ == "__main__":
    # Small shapes: batch=2, step_dim=8, feature_dim=32.
    B, S, F = 2, 8, 32

    key = jax.random.PRNGKey(0)
    kx, kw = jax.random.split(key)

    x = jax.random.normal(kx, (B, S, F), dtype=jnp.float32)

    # nn.init.xavier_uniform_ on a (feature_dim, 1) tensor: fan_in=1, fan_out=F.
    bound = (6.0 / (1 + F)) ** 0.5
    weight = jax.random.uniform(kw, (F, 1), jnp.float32, -bound, bound)
    bias = jnp.zeros((S,), dtype=jnp.float32)   # self.b initialized as zeros

    out = attention_forward(x, weight, bias)
    out = jax.block_until_ready(out)

    ref = attention_reference(x, weight, bias)
    assert out.shape == (B, F)
    assert jnp.allclose(out, ref, atol=1e-5, rtol=1e-5), (
        "max abs err = %e" % float(jnp.max(jnp.abs(out - ref))))

    print("KERNEL_OK")
</pallas_src>

<mosaic_0001>
module attributes {stable_mosaic.version = 11 : i64} {
  func.func @_attention_kernel_mxu(%arg0: i32, %arg1: memref<2x8x32xf32, #tpu.memory_space<vmem>>, %arg2: memref<1x1x32xf32, #tpu.memory_space<vmem>>, %arg3: memref<1x1x8xf32, #tpu.memory_space<vmem>>, %arg4: memref<2x1x32xf32, #tpu.memory_space<vmem>>) attributes {dimension_semantics = [#tpu.dimension_semantics<parallel>], iteration_bounds = array<i64: 1>, scalar_prefetch = 0 : i64, scratch_operands = 0 : i64, tpu.core_type = #tpu.core_type<tc>, window_params = [{transform_indices = @transform_0, window_bounds = array<i64: 2, 8, 32>}, {pipeline_mode = #tpu.pipeline_mode<synchronous>, transform_indices = @transform_1, window_bounds = array<i64: 1, 1, 32>}, {pipeline_mode = #tpu.pipeline_mode<synchronous>, transform_indices = @transform_2, window_bounds = array<i64: 1, 1, 8>}, {transform_indices = @transform_3, window_bounds = array<i64: 2, 1, 32>}]} {
    %c0 = arith.constant 0 : index
    %c0_0 = arith.constant 0 : index
    %c0_1 = arith.constant 0 : index
    %0 = vector.load %arg1[%c0, %c0_0, %c0_1] : memref<2x8x32xf32, #tpu.memory_space<vmem>>, vector<2x8x32xf32>
    %c0_2 = arith.constant 0 : index
    %c0_3 = arith.constant 0 : index
    %c0_4 = arith.constant 0 : index
    %1 = vector.load %arg2[%c0_2, %c0_3, %c0_4] : memref<1x1x32xf32, #tpu.memory_space<vmem>>, vector<1x1x32xf32>
    %c0_5 = arith.constant 0 : index
    %c0_6 = arith.constant 0 : index
    %c0_7 = arith.constant 0 : index
    %2 = vector.load %arg3[%c0_5, %c0_6, %c0_7] : memref<1x1x8xf32, #tpu.memory_space<vmem>>, vector<1x1x8xf32>
    %3 = vector.shape_cast %1 : vector<1x1x32xf32> to vector<1x1x32xf32>
    %4 = vector.broadcast %3 : vector<1x1x32xf32> to vector<2x1x32xf32>
    "tpu.trace_start"() <{level = 10 : i32, message = "bqd,bkd->bqk"}> : () -> ()
    %cst = arith.constant dense<0.000000e+00> : vector<2x1x8xf32>
    %5 = tpu.matmul %4, %0, %cst {dimension_numbers = #tpu.dot_dimension_numbers<[2], [2], [1], [1], [0, 0, 0, 1, 1, 1], [0], [0]>, precision = #tpu.contract_precision<fp32>} : vector<2x1x32xf32>, vector<2x8x32xf32>, vector<2x1x8xf32> -> vector<2x1x8xf32>
    "tpu.trace_stop"() : () -> ()
    %6 = vector.broadcast %2 : vector<1x1x8xf32> to vector<2x1x8xf32>
    %7 = arith.addf %5, %6 : vector<2x1x8xf32>
    %8 = math.tanh %7 : vector<2x1x8xf32>
    %9 = math.exp %8 : vector<2x1x8xf32>
    %cst_8 = arith.constant dense<0.000000e+00> : vector<2x1xf32>
    %10 = vector.multi_reduction <add>, %9, %cst_8 [2] : vector<2x1x8xf32> to vector<2x1xf32>
    %11 = vector.shape_cast %10 : vector<2x1xf32> to vector<2x1x1xf32>
    %12 = vector.broadcast %11 : vector<2x1x1xf32> to vector<2x1x8xf32>
    %13 = arith.divf %9, %12 : vector<2x1x8xf32>
    %cst_9 = arith.constant 1.000000e-10 : f32
    %14 = vector.broadcast %cst_9 : f32 to vector<2x1x8xf32>
    %15 = arith.addf %13, %14 : vector<2x1x8xf32>
    "tpu.trace_start"() <{level = 10 : i32, message = "bqk,bkd->bqd"}> : () -> ()
    %cst_10 = arith.constant dense<0.000000e+00> : vector<2x1x32xf32>
    %16 = tpu.matmul %15, %0, %cst_10 {dimension_numbers = #tpu.dot_dimension_numbers<[2], [1], [1], [2], [0, 0, 0, 1, 1, 2], [0], [0]>, precision = #tpu.contract_precision<fp32>} : vector<2x1x8xf32>, vector<2x8x32xf32>, vector<2x1x32xf32> -> vector<2x1x32xf32>
    "tpu.trace_stop"() : () -> ()
    %c0_11 = arith.constant 0 : index
    %c0_12 = arith.constant 0 : index
    %c0_13 = arith.constant 0 : index
    %17 = vector.load %arg4[%c0_11, %c0_12, %c0_13] : memref<2x1x32xf32, #tpu.memory_space<vmem>>, vector<2x1x32xf32>
    tpu.vector_store %arg4[%c0_11, %c0_12, %c0_13], %16 {strides = array<i32>} : memref<2x1x32xf32, #tpu.memory_space<vmem>>, vector<2x1x32xf32>,
    return
  }
  func.func @transform_0(%arg0: i32) -> (i32, i32, i32) {
    %c0_i32 = arith.constant 0 : i32
    %c0_i32_0 = arith.constant 0 : i32
    %c0_i32_1 = arith.constant 0 : i32
    return %arg0, %c0_i32, %c0_i32_0 : i32, i32, i32
  }
  func.func @transform_1(%arg0: i32) -> (i32, i32, i32) {
    %c0_i32 = arith.constant 0 : i32
    %c0_i32_0 = arith.constant 0 : i32
    %c0_i32_1 = arith.constant 0 : i32
    %c0_i32_2 = arith.constant 0 : i32
    return %c0_i32, %c0_i32_0, %c0_i32_1 : i32, i32, i32
  }
  func.func @transform_2(%arg0: i32) -> (i32, i32, i32) {
    %c0_i32 = arith.constant 0 : i32
    %c0_i32_0 = arith.constant 0 : i32
    %c0_i32_1 = arith.constant 0 : i32
    %c0_i32_2 = arith.constant 0 : i32
    return %c0_i32, %c0_i32_0, %c0_i32_1 : i32, i32, i32
  }
  func.func @transform_3(%arg0: i32) -> (i32, i32, i32) {
    %c0_i32 = arith.constant 0 : i32
    %c0_i32_0 = arith.constant 0 : i32
    %c0_i32_1 = arith.constant 0 : i32
    return %arg0, %c0_i32, %c0_i32_0 : i32, i32, i32
  }
}

module attributes {stable_mosaic.version = 11 : i64} {
  func.func @_attention_kernel_vpu(%arg0: i32, %arg1: memref<2x8x32xf32, #tpu.memory_space<vmem>>, %arg2: memref<1x32xf32, #tpu.memory_space<vmem>>, %arg3: memref<1x8xf32, #tpu.memory_space<vmem>>, %arg4: memref<2x32xf32, #tpu.memory_space<vmem>>) attributes {dimension_semantics = [#tpu.dimension_semantics<parallel>], iteration_bounds = array<i64: 1>, scalar_prefetch = 0 : i64, scratch_operands = 0 : i64, tpu.core_type = #tpu.core_type<tc>, window_params = [{transform_indices = @transform_0, window_bounds = array<i64: 2, 8, 32>}, {pipeline_mode = #tpu.pipeline_mode<synchronous>, transform_indices = @transform_1, window_bounds = array<i64: 1, 32>}, {pipeline_mode = #tpu.pipeline_mode<synchronous>, transform_indices = @transform_2, window_bounds = array<i64: 1, 8>}, {transform_indices = @transform_3, window_bounds = array<i64: 2, 32>}]} {
    %c0 = arith.constant 0 : index
    %c0_0 = arith.constant 0 : index
    %c0_1 = arith.constant 0 : index
    %0 = vector.load %arg1[%c0, %c0_0, %c0_1] : memref<2x8x32xf32, #tpu.memory_space<vmem>>, vector<2x8x32xf32>
    %c0_2 = arith.constant 0 : index
    %c0_3 = arith.constant 0 : index
    %1 = vector.load %arg2[%c0_2, %c0_3] : memref<1x32xf32, #tpu.memory_space<vmem>>, vector<1x32xf32>
    %c0_4 = arith.constant 0 : index
    %c0_5 = arith.constant 0 : index
    %2 = vector.load %arg3[%c0_4, %c0_5] : memref<1x8xf32, #tpu.memory_space<vmem>>, vector<1x8xf32>
    %3 = vector.shape_cast %1 : vector<1x32xf32> to vector<1x1x32xf32>
    %4 = vector.broadcast %3 : vector<1x1x32xf32> to vector<2x8x32xf32>
    %5 = arith.mulf %0, %4 : vector<2x8x32xf32>
    %cst = arith.constant dense<0.000000e+00> : vector<2x8xf32>
    %6 = vector.multi_reduction <add>, %5, %cst [2] : vector<2x8x32xf32> to vector<2x8xf32>
    %7 = vector.broadcast %2 : vector<1x8xf32> to vector<2x8xf32>
    %8 = arith.addf %6, %7 : vector<2x8xf32>
    %9 = math.tanh %8 : vector<2x8xf32>
    %10 = math.exp %9 : vector<2x8xf32>
    %cst_6 = arith.constant dense<0.000000e+00> : vector<2xf32>
    %11 = vector.multi_reduction <add>, %10, %cst_6 [1] : vector<2x8xf32> to vector<2xf32>
    %12 = vector.shape_cast %11 : vector<2xf32> to vector<2x1xf32>
    %13 = vector.broadcast %12 : vector<2x1xf32> to vector<2x8xf32>
    %14 = arith.divf %10, %13 : vector<2x8xf32>
    %cst_7 = arith.constant 1.000000e-10 : f32
    %15 = vector.broadcast %cst_7 : f32 to vector<2x8xf32>
    %16 = arith.addf %14, %15 : vector<2x8xf32>
    %17 = vector.shape_cast %16 : vector<2x8xf32> to vector<2x8x1xf32>
    %18 = vector.broadcast %17 : vector<2x8x1xf32> to vector<2x8x32xf32>
    %19 = arith.mulf %0, %18 : vector<2x8x32xf32>
    %cst_8 = arith.constant dense<0.000000e+00> : vector<2x32xf32>
    %20 = vector.multi_reduction <add>, %19, %cst_8 [1] : vector<2x8x32xf32> to vector<2x32xf32>
    %c0_9 = arith.constant 0 : index
    %c0_10 = arith.constant 0 : index
    %21 = vector.load %arg4[%c0_9, %c0_10] : memref<2x32xf32, #tpu.memory_space<vmem>>, vector<2x32xf32>
    tpu.vector_store %arg4[%c0_9, %c0_10], %20 {strides = array<i32>} : memref<2x32xf32, #tpu.memory_space<vmem>>, vector<2x32xf32>,
    return
  }
  func.func @transform_0(%arg0: i32) -> (i32, i32, i32) {
    %c0_i32 = arith.constant 0 : i32
    %c0_i32_0 = arith.constant 0 : i32
    %c0_i32_1 = arith.constant 0 : i32
    return %arg0, %c0_i32, %c0_i32_0 : i32, i32, i32
  }
  func.func @transform_1(%arg0: i32) -> (i32, i32) {
    %c0_i32 = arith.constant 0 : i32
    %c0_i32_0 = arith.constant 0 : i32
    %c0_i32_1 = arith.constant 0 : i32
    return %c0_i32, %c0_i32_0 : i32, i32
  }
  func.func @transform_2(%arg0: i32) -> (i32, i32) {
    %c0_i32 = arith.constant 0 : i32
    %c0_i32_0 = arith.constant 0 : i32
    %c0_i32_1 = arith.constant 0 : i32
    return %c0_i32, %c0_i32_0 : i32, i32
  }
  func.func @transform_3(%arg0: i32) -> (i32, i32) {
    %c0_i32 = arith.constant 0 : i32
    %c0_i32_0 = arith.constant 0 : i32
    return %arg0, %c0_i32 : i32, i32
  }
}

</mosaic_0001>

<llo_original>
// kernel: tpu_custom_call.1
$region0: #{tpu_custom_call.1}
  #allocation0 [shape = 'u32[]', space=smem, size = 0x4, offset = 0x4, fixed_abs, tag = 'smem constant byte address 0x4 - core index']
  #allocation1 [shape = 'u32[144,128]{1,0:T(1,128)}', space=vmem, size = 0x12000, scoped, tag = 'internal scratch']
  %s0 = inlined_call_operand.hbm [shape: f32[2,8,32], index: 0, kind: input, shape index: {}]
  %s1 = inlined_call_operand.vmem [shape: f32[1,1,32], index: 1, kind: input, shape index: {}]
  %s2 = inlined_call_operand.vmem [shape: f32[1,1,8], index: 2, kind: input, shape index: {}]
  %s3 = inlined_call_operand.hbm [shape: f32[2,1,32], index: 3, kind: output, shape index: {}]
  %s4 = sld [smem:[#allocation0]]
  $region26: #{tpu_custom_call.1} parent=0
    _
  %s6 = ssub.s32 1, %s4
  %s7 = scalar_select 0, %s6, %s4
  $region1: #{tpu_custom_call.1} parent=0
    #allocation2 [shape = 'u8[8192]{0}', space=vmem, size = 0x2000, scoped, tag = 'input window, operand 0, single buffered']
    #allocation3 [shape = 's32[1]{0}', space=sflag, size = 0x4, scoped, tag = 'scoped memory for tpu_custom_call.1']
    #allocation4 [shape = 's32[1]{0}', space=sflag, size = 0x4, scoped, tag = 'scoped memory for tpu_custom_call.1']
    #allocation5 [shape = 'u8[1024]{0}', space=vmem, size = 0x400, scoped, tag = 'output window, operand 0, single buffered']
    %8 = vsyncpa [#allocation3], 0
    %9 = vsyncpa [#allocation4], 0
    // Predicated region
    $region2: #{tpu_custom_call.1} parent=1 // pred_check
      _
    $region3: #{tpu_custom_call.1} parent=1 // pred_check_branch
      %11 = sbr.rel (0) target = $region5
    $region4: #{tpu_custom_call.1} parent=1 // pred_region
      %s13 = ssub.s32 256, 256
      %14 = vsyncadd [#allocation3], %s13
      %s15 = sshll.u32 [#allocation2], 4
      %s16 = int_to_ptr.vmem [resolvable:$true] %s15
      %21 = dma.hbm_to_vmem [thread:$0]  %s0, 256, %s16, [#allocation3], 128, 128, 8
    $region5: #{tpu_custom_call.1} parent=1 // pred_fallthru
      _
    // Predicated region
    $region6: #{tpu_custom_call.1} parent=1 // pred_check
      _
    $region7: #{tpu_custom_call.1} parent=1 // pred_check_branch
      %23 = sbr.rel (0) target = $region9
    $region8: #{tpu_custom_call.1} parent=1 // pred_region
      _
    $region9: #{tpu_custom_call.1} parent=1 // pred_fallthru
      _
    // Predicated region
    $region10: #{tpu_custom_call.1} parent=1 // pred_check
      _
    $region11: #{tpu_custom_call.1} parent=1 // pred_check_branch
      %25 = sbr.rel (0) target = $region13
    $region12: #{tpu_custom_call.1} parent=1 // pred_region
      _
    $region13: #{tpu_custom_call.1} parent=1 // pred_fallthru
      _
    // Predicated region
    $region14: #{tpu_custom_call.1} parent=1 // pred_check
      _
    $region15: #{tpu_custom_call.1} parent=1 // pred_check_branch
      %27 = sbr.rel (0) target = $region17
    $region16: #{tpu_custom_call.1} parent=1 // pred_region
      %28 = dma.done [#allocation3], 256
    $region17: #{tpu_custom_call.1} parent=1 // pred_fallthru
      _
    %v29 = vld [vmem:[#allocation2] sm:$0xff]
    %v30 = vld [vmem:[#allocation2 + $0x8] sm:$0xff]
    %v31 = vld [vmem:[%s1] sm:$0x1]
    %v32 = vld [vmem:[%s2] sm:$0x1]
    %vm33 = vcmask 261120
    %v35 = vsel %vm33, %v31, 0
    %v38 = vsel %vm33, %v29, 0
    %40 = vmatprep.subr.mxu0 0.0
    %v41 = vand.u32 %v38, 4294901760
    %42 = vmatpush1.xpose.msra.mxu0 %v41
    %43 = vmatprep.subr.mxu0 0.0
    %44 = vmatpush1.xpose.msra.mxu0 0.0
    %45 = vmatprep.subr.mxu0 0.0
    %46 = vmatpush1.xpose.msra.mxu0 0.0
    %47 = vmatprep.subr.mxu0 0.0
    %48 = vmatpush1.xpose.msra.mxu0 0.0
    %49 = vmatprep.subr.mxu0 0.0
    %50 = vmatpush1.xpose.msra.mxu0 0.0
    %51 = vmatprep.subr.mxu0 0.0
    %52 = vmatpush1.xpose.msra.mxu0 0.0
    %53 = vmatprep.subr.mxu0 0.0
    %54 = vmatpush1.xpose.msra.mxu0 0.0
    %55 = vmatprep.subr.mxu0 0.0
    %56 = vmatpush1.xpose.msra.mxu0 0.0
    %57 = vmatprep.subr.mxu0 0.0
    %58 = vmatpush1.xpose.msra.mxu0 0.0
    %59 = vmatprep.subr.mxu0 0.0
    %60 = vmatpush1.xpose.msra.mxu0 0.0
    %61 = vmatprep.subr.mxu0 0.0
    %62 = vmatpush1.xpose.msra.mxu0 0.0
    %63 = vmatprep.subr.mxu0 0.0
    %64 = vmatpush1.xpose.msra.mxu0 0.0
    %65 = vmatprep.subr.mxu0 0.0
    %66 = vmatpush1.xpose.msra.mxu0 0.0
    %67 = vmatprep.subr.mxu0 0.0
    %68 = vmatpush1.xpose.msra.mxu0 0.0
    %69 = vmatprep.subr.mxu0 0.0
    %70 = vmatpush1.xpose.msra.mxu0 0.0
    %71 = vmatprep.subr.mxu0 0.0
    %72 = vmatpush1.xpose.msra.mxu0 0.0
    %73 = vmatprep.subr.mxu0 0.0
    %74 = vmatpush1.xpose.msra.mxu0 0.0
    %75 = vmatprep.subr.mxu0 0.0
    %76 = vmatpush1.xpose.msra.mxu0 0.0
    %77 = vmatprep.subr.mxu0 0.0
    %78 = vmatpush1.xpose.msra.mxu0 0.0
    %79 = vmatprep.subr.mxu0 0.0
    %80 = vmatpush1.xpose.msra.mxu0 0.0
    %81 = vmatprep.subr.mxu0 0.0
    %82 = vmatpush1.xpose.msra.mxu0 0.0
    %83 = vmatprep.subr.mxu0 0.0
    %84 = vmatpush1.xpose.msra.mxu0 0.0
    %85 = vmatprep.subr.mxu0 0.0
    %86 = vmatpush1.xpose.msra.mxu0 0.0
    %87 = vmatprep.subr.mxu0 0.0
    %88 = vmatpush1.xpose.msra.mxu0 0.0
    %89 = vmatprep.subr.mxu0 0.0
    %90 = vmatpush1.xpose.msra.mxu0 0.0
    %91 = vmatprep.subr.mxu0 0.0
    %92 = vmatpush1.xpose.msra.mxu0 0.0
    %93 = vmatprep.subr.mxu0 0.0
    %94 = vmatpush1.xpose.msra.mxu0 0.0
    %95 = vmatprep.subr.mxu0 0.0
    %96 = vmatpush1.xpose.msra.mxu0 0.0
    %97 = vmatprep.subr.mxu0 0.0
    %98 = vmatpush1.xpose.msra.mxu0 0.0
    %99 = vmatprep.subr.mxu0 0.0
    %100 = vmatpush1.xpose.msra.mxu0 0.0
    %101 = vmatprep.subr.mxu0 0.0
    %102 = vmatpush1.xpose.msra.mxu0 0.0
    %103 = vmatprep.subr.mxu0 0.0
    %104 = vmatpush1.xpose.msra.mxu0 0.0
    %105 = vmatprep.mubr.f32.mxu0 0.0
    %v106 = vand.u32 %v35, 4294901760
    %v107 = vsub.f32 %v35, %v106
    %v108 = vand.u32 %v107, 4294901760
    %v109 = vsub.f32 %v107, %v108
    %v110 = vand.u32 %v109, 4294901760
    %111 = vmatmul.mubr.f32.gmra.mrb[0].mxu0 %v110
    %v112 = vpop.f32.mrb[0].mxu0
    %v113 = vadd.f32 %v32, %v112
    %v114 = vpop.f32.mrb[0].mxu0
    %115 = vdwg.mxu0
    %116 = vmatprep.subr.mxu0 0.0
    %v117 = vand.u32 %v38, 4294901760
    %v118 = vsub.f32 %v38, %v117
    %v119 = vand.u32 %v118, 4294901760
    %v120 = vsub.f32 %v118, %v119
    %v121 = vand.u32 %v120, 4294901760
    %122 = vmatpush1.xpose.msra.mxu0 %v121
    %123 = vmatprep.subr.mxu0 0.0
    %124 = vmatpush1.xpose.msra.mxu0 0.0
    %125 = vmatprep.subr.mxu0 0.0
    %126 = vmatpush1.xpose.msra.mxu0 0.0
    %127 = vmatprep.subr.mxu0 0.0
    %128 = vmatpush1.xpose.msra.mxu0 0.0
    %129 = vmatprep.subr.mxu0 0.0
    %130 = vmatpush1.xpose.msra.mxu0 0.0
    %131 = vmatprep.subr.mxu0 0.0
    %132 = vmatpush1.xpose.msra.mxu0 0.0
    %133 = vmatprep.subr.mxu0 0.0
    %134 = vmatpush1.xpose.msra.mxu0 0.0
    %135 = vmatprep.subr.mxu0 0.0
    %136 = vmatpush1.xpose.msra.mxu0 0.0
    %137 = vmatprep.subr.mxu0 0.0
    %138 = vmatpush1.xpose.msra.mxu0 0.0
    %139 = vmatprep.subr.mxu0 0.0
    %140 = vmatpush1.xpose.msra.mxu0 0.0
    %141 = vmatprep.subr.mxu0 0.0
    %142 = vmatpush1.xpose.msra.mxu0 0.0
    %143 = vmatprep.subr.mxu0 0.0
    %144 = vmatpush1.xpose.msra.mxu0 0.0
    %145 = vmatprep.subr.mxu0 0.0
    %146 = vmatpush1.xpose.msra.mxu0 0.0
    %147 = vmatprep.subr.mxu0 0.0
    %148 = vmatpush1.xpose.msra.mxu0 0.0
    %149 = vmatprep.subr.mxu0 0.0
    %150 = vmatpush1.xpose.msra.mxu0 0.0
    %151 = vmatprep.subr.mxu0 0.0
    %152 = vmatpush1.xpose.msra.mxu0 0.0
    %153 = vmatprep.subr.mxu0 0.0
    %154 = vmatpush1.xpose.msra.mxu0 0.0
    %155 = vmatprep.subr.mxu0 0.0
    %156 = vmatpush1.xpose.msra.mxu0 0.0
    %157 = vmatprep.subr.mxu0 0.0
    %158 = vmatpush1.xpose.msra.mxu0 0.0
    %159 = vmatprep.subr.mxu0 0.0
    %160 = vmatpush1.xpose.msra.mxu0 0.0
    %161 = vmatprep.subr.mxu0 0.0
    %162 = vmatpush1.xpose.msra.mxu0 0.0
    %163 = vmatprep.subr.mxu0 0.0
    %164 = vmatpush1.xpose.msra.mxu0 0.0
    %165 = vmatprep.subr.mxu0 0.0
    %166 = vmatpush1.xpose.msra.mxu0 0.0
    %167 = vmatprep.subr.mxu0 0.0
    %168 = vmatpush1.xpose.msra.mxu0 0.0
    %169 = vmatprep.subr.mxu0 0.0
    %170 = vmatpush1.xpose.msra.mxu0 0.0
    %171 = vmatprep.subr.mxu0 0.0
    %172 = vmatpush1.xpose.msra.mxu0 0.0
    %173 = vmatprep.subr.mxu0 0.0
    %174 = vmatpush1.xpose.msra.mxu0 0.0
    %175 = vmatprep.subr.mxu0 0.0
    %176 = vmatpush1.xpose.msra.mxu0 0.0
    %177 = vmatprep.subr.mxu0 0.0
    %178 = vmatpush1.xpose.msra.mxu0 0.0
    %179 = vmatprep.subr.mxu0 0.0
    %180 = vmatpush1.xpose.msra.mxu0 0.0
    %181 = vmatprep.subr.mxu0 0.0
    %182 = vmatpush1.xpose.msra.mxu0 0.0
    %183 = vmatprep.subr.mxu0 0.0
    %184 = vmatpush1.xpose.msra.mxu0 0.0
    %185 = vmatprep.mubr.f32.mxu0 0.0
    %v186 = vand.u32 %v35, 4294901760
    %187 = vmatmul.mubr.f32.gmra.mrb[0].mxu0 %v186
    %v188 = vpop.f32.mrb[0].mxu0
    %v189 = vadd.f32 %v113, %v188
    %v190 = vpop.f32.mrb[0].mxu0
    %191 = vdwg.mxu0
    %192 = vmatprep.subr.mxu0 0.0
    %v193 = vand.u32 %v38, 4294901760
    %v194 = vsub.f32 %v38, %v193
    %195 = vmatpush1.xpose.msra.mxu0 %v194
    %196 = vmatprep.subr.mxu0 0.0
    %197 = vmatpush1.xpose.msra.mxu0 0.0
    %198 = vmatprep.subr.mxu0 0.0
    %199 = vmatpush1.xpose.msra.mxu0 0.0
    %200 = vmatprep.subr.mxu0 0.0
    %201 = vmatpush1.xpose.msra.mxu0 0.0
    %202 = vmatprep.subr.mxu0 0.0
    %203 = vmatpush1.xpose.msra.mxu0 0.0
    %204 = vmatprep.subr.mxu0 0.0
    %205 = vmatpush1.xpose.msra.mxu0 0.0
    %206 = vmatprep.subr.mxu0 0.0
    %207 = vmatpush1.xpose.msra.mxu0 0.0
    %208 = vmatprep.subr.mxu0 0.0
    %209 = vmatpush1.xpose.msra.mxu0 0.0
    %210 = vmatprep.subr.mxu0 0.0
    %211 = vmatpush1.xpose.msra.mxu0 0.0
    %212 = vmatprep.subr.mxu0 0.0
    %213 = vmatpush1.xpose.msra.mxu0 0.0
    %214 = vmatprep.subr.mxu0 0.0
    %215 = vmatpush1.xpose.msra.mxu0 0.0
    %216 = vmatprep.subr.mxu0 0.0
    %217 = vmatpush1.xpose.msra.mxu0 0.0
    %218 = vmatprep.subr.mxu0 0.0
    %219 = vmatpush1.xpose.msra.mxu0 0.0
    %220 = vmatprep.subr.mxu0 0.0
    %221 = vmatpush1.xpose.msra.mxu0 0.0
    %222 = vmatprep.subr.mxu0 0.0
    %223 = vmatpush1.xpose.msra.mxu0 0.0
    %224 = vmatprep.subr.mxu0 0.0
    %225 = vmatpush1.xpose.msra.mxu0 0.0
    %226 = vmatprep.subr.mxu0 0.0
    %227 = vmatpush1.xpose.msra.mxu0 0.0
    %228 = vmatprep.subr.mxu0 0.0
    %229 = vmatpush1.xpose.msra.mxu0 0.0
    %230 = vmatprep.subr.mxu0 0.0
    %231 = vmatpush1.xpose.msra.mxu0 0.0
    %232 = vmatprep.subr.mxu0 0.0
    %233 = vmatpush1.xpose.msra.mxu0 0.0
    %234 = vmatprep.subr.mxu0 0.0
    %235 = vmatpush1.xpose.msra.mxu0 0.0
    %236 = vmatprep.subr.mxu0 0.0
    %237 = vmatpush1.xpose.msra.mxu0 0.0
    %238 = vmatprep.subr.mxu0 0.0
    %239 = vmatpush1.xpose.msra.mxu0 0.0
    %240 = vmatprep.subr.mxu0 0.0
    %241 = vmatpush1.xpose.msra.mxu0 0.0
    %242 = vmatprep.subr.mxu0 0.0
    %243 = vmatpush1.xpose.msra.mxu0 0.0
    %244 = vmatprep.subr.mxu0 0.0
    %245 = vmatpush1.xpose.msra.mxu0 0.0
    %246 = vmatprep.subr.mxu0 0.0
    %247 = vmatpush1.xpose.msra.mxu0 0.0
    %248 = vmatprep.subr.mxu0 0.0
    %249 = vmatpush1.xpose.msra.mxu0 0.0
    %250 = vmatprep.subr.mxu0 0.0
    %251 = vmatpush1.xpose.msra.mxu0 0.0
    %252 = vmatprep.subr.mxu0 0.0
    %253 = vmatpush1.xpose.msra.mxu0 0.0
    %254 = vmatprep.subr.mxu0 0.0
    %255 = vmatpush1.xpose.msra.mxu0 0.0
    %256 = vmatprep.subr.mxu0 0.0
    %257 = vmatpush1.xpose.msra.mxu0 0.0
    %258 = vmatprep.mubr.f32.mxu0 0.0
    %v259 = vand.u32 %v35, 4294901760
    %v260 = vsub.f32 %v35, %v259
    %261 = vmatmul.mubr.f32.gmra.mrb[0].mxu0 %v260
    %v262 = vpop.f32.mrb[0].mxu0
    %v263 = vadd.f32 %v189, %v262
    %v264 = vpop.f32.mrb[0].mxu0
    %265 = vdwg.mxu0
    %266 = vmatprep.subr.mxu0 0.0
    %v267 = vand.u32 %v38, 4294901760
    %268 = vmatpush1.xpose.msra.mxu0 %v267
    %269 = vmatprep.subr.mxu0 0.0
    %270 = vmatpush1.xpose.msra.mxu0 0.0
    %271 = vmatprep.subr.mxu0 0.0
    %272 = vmatpush1.xpose.msra.mxu0 0.0
    %273 = vmatprep.subr.mxu0 0.0
    %274 = vmatpush1.xpose.msra.mxu0 0.0
    %275 = vmatprep.subr.mxu0 0.0
    %276 = vmatpush1.xpose.msra.mxu0 0.0
    %277 = vmatprep.subr.mxu0 0.0
    %278 = vmatpush1.xpose.msra.mxu0 0.0
    %279 = vmatprep.subr.mxu0 0.0
    %280 = vmatpush1.xpose.msra.mxu0 0.0
    %281 = vmatprep.subr.mxu0 0.0
    %282 = vmatpush1.xpose.msra.mxu0 0.0
    %283 = vmatprep.subr.mxu0 0.0
    %284 = vmatpush1.xpose.msra.mxu0 0.0
    %285 = vmatprep.subr.mxu0 0.0
    %286 = vmatpush1.xpose.msra.mxu0 0.0
    %287 = vmatprep.subr.mxu0 0.0
    %288 = vmatpush1.xpose.msra.mxu0 0.0
    %289 = vmatprep.subr.mxu0 0.0
    %290 = vmatpush1.xpose.msra.mxu0 0.0
    %291 = vmatprep.subr.mxu0 0.0
    %292 = vmatpush1.xpose.msra.mxu0 0.0
    %293 = vmatprep.subr.mxu0 0.0
    %294 = vmatpush1.xpose.msra.mxu0 0.0
    %295 = vmatprep.subr.mxu0 0.0
    %296 = vmatpush1.xpose.msra.mxu0 0.0
    %297 = vmatprep.subr.mxu0 0.0
    %298 = vmatpush1.xpose.msra.mxu0 0.0
    %299 = vmatprep.subr.mxu0 0.0
    %300 = vmatpush1.xpose.msra.mxu0 0.0
    %301 = vmatprep.subr.mxu0 0.0
    %302 = vmatpush1.xpose.msra.mxu0 0.0
    %303 = vmatprep.subr.mxu0 0.0
    %304 = vmatpush1.xpose.msra.mxu0 0.0
    %305 = vmatprep.subr.mxu0 0.0
    %306 = vmatpush1.xpose.msra.mxu0 0.0
    %307 = vmatprep.subr.mxu0 0.0
    %308 = vmatpush1.xpose.msra.mxu0 0.0
    %309 = vmatprep.subr.mxu0 0.0
    %310 = vmatpush1.xpose.msra.mxu0 0.0
    %311 = vmatprep.subr.mxu0 0.0
    %312 = vmatpush1.xpose.msra.mxu0 0.0
    %313 = vmatprep.subr.mxu0 0.0
    %314 = vmatpush1.xpose.msra.mxu0 0.0
    %315 = vmatprep.subr.mxu0 0.0
    %316 = vmatpush1.xpose.msra.mxu0 0.0
    %317 = vmatprep.subr.mxu0 0.0
    %318 = vmatpush1.xpose.msra.mxu0 0.0
    %319 = vmatprep.subr.mxu0 0.0
    %320 = vmatpush1.xpose.msra.mxu0 0.0
    %321 = vmatprep.subr.mxu0 0.0
    %322 = vmatpush1.xpose.msra.mxu0 0.0
    %323 = vmatprep.subr.mxu0 0.0
    %324 = vmatpush1.xpose.msra.mxu0 0.0
    %325 = vmatprep.subr.mxu0 0.0
    %326 = vmatpush1.xpose.msra.mxu0 0.0
    %327 = vmatprep.subr.mxu0 0.0
    %328 = vmatpush1.xpose.msra.mxu0 0.0
    %329 = vmatprep.subr.mxu0 0.0
    %330 = vmatpush1.xpose.msra.mxu0 0.0
    %331 = vmatprep.mubr.f32.mxu0 0.0
    %v332 = vand.u32 %v35, 4294901760
    %v333 = vsub.f32 %v35, %v332
    %v334 = vand.u32 %v333, 4294901760
    %335 = vmatmul.mubr.f32.gmra.mrb[0].mxu0 %v334
    %v336 = vpop.f32.mrb[0].mxu0
    %v337 = vadd.f32 %v263, %v336
    %v338 = vpop.f32.mrb[0].mxu0
    %339 = vdwg.mxu0
    %340 = vmatprep.subr.mxu0 0.0
    %v341 = vand.u32 %v38, 4294901760
    %v342 = vsub.f32 %v38, %v341
    %v343 = vand.u32 %v342, 4294901760
    %344 = vmatpush1.xpose.msra.mxu0 %v343
    %345 = vmatprep.subr.mxu0 0.0
    %346 = vmatpush1.xpose.msra.mxu0 0.0
    %347 = vmatprep.subr.mxu0 0.0
    %348 = vmatpush1.xpose.msra.mxu0 0.0
    %349 = vmatprep.subr.mxu0 0.0
    %350 = vmatpush1.xpose.msra.mxu0 0.0
    %351 = vmatprep.subr.mxu0 0.0
    %352 = vmatpush1.xpose.msra.mxu0 0.0
    %353 = vmatprep.subr.mxu0 0.0
    %354 = vmatpush1.xpose.msra.mxu0 0.0
    %355 = vmatprep.subr.mxu0 0.0
    %356 = vmatpush1.xpose.msra.mxu0 0.0
    %357 = vmatprep.subr.mxu0 0.0
    %358 = vmatpush1.xpose.msra.mxu0 0.0
    %359 = vmatprep.subr.mxu0 0.0
    %360 = vmatpush1.xpose.msra.mxu0 0.0
    %361 = vmatprep.subr.mxu0 0.0
    %362 = vmatpush1.xpose.msra.mxu0 0.0
    %363 = vmatprep.subr.mxu0 0.0
    %364 = vmatpush1.xpose.msra.mxu0 0.0
    %365 = vmatprep.subr.mxu0 0.0
    %366 = vmatpush1.xpose.msra.mxu0 0.0
    %367 = vmatprep.subr.mxu0 0.0
    %368 = vmatpush1.xpose.msra.mxu0 0.0
    %369 = vmatprep.subr.mxu0 0.0
    %370 = vmatpush1.xpose.msra.mxu0 0.0
    %371 = vmatprep.subr.mxu0 0.0
    %372 = vmatpush1.xpose.msra.mxu0 0.0
    %373 = vmatprep.subr.mxu0 0.0
    %374 = vmatpush1.xpose.msra.mxu0 0.0
    %375 = vmatprep.subr.mxu0 0.0
    %376 = vmatpush1.xpose.msra.mxu0 0.0
    %377 = vmatprep.subr.mxu0 0.0
    %378 = vmatpush1.xpose.msra.mxu0 0.0
    %379 = vmatprep.subr.mxu0 0.0
    %380 = vmatpush1.xpose.msra.mxu0 0.0
    %381 = vmatprep.subr.mxu0 0.0
    %382 = vmatpush1.xpose.msra.mxu0 0.0
    %383 = vmatprep.subr.mxu0 0.0
    %384 = vmatpush1.xpose.msra.mxu0 0.0
    %385 = vmatprep.subr.mxu0 0.0
    %386 = vmatpush1.xpose.msra.mxu0 0.0
    %387 = vmatprep.subr.mxu0 0.0
    %388 = vmatpush1.xpose.msra.mxu0 0.0
    %389 = vmatprep.subr.mxu0 0.0
    %390 = vmatpush1.xpose.msra.mxu0 0.0
    %391 = vmatprep.subr.mxu0 0.0
    %392 = vmatpush1.xpose.msra.mxu0 0.0
    %393 = vmatprep.subr.mxu0 0.0
    %394 = vmatpush1.xpose.msra.mxu0 0.0
    %395 = vmatprep.subr.mxu0 0.0
    %396 = vmatpush1.xpose.msra.mxu0 0.0
    %397 = vmatprep.subr.mxu0 0.0
    %398 = vmatpush1.xpose.msra.mxu0 0.0
    %399 = vmatprep.subr.mxu0 0.0
    %400 = vmatpush1.xpose.msra.mxu0 0.0
    %401 = vmatprep.subr.mxu0 0.0
    %402 = vmatpush1.xpose.msra.mxu0 0.0
    %403 = vmatprep.subr.mxu0 0.0
    %404 = vmatpush1.xpose.msra.mxu0 0.0
    %405 = vmatprep.subr.mxu0 0.0
    %406 = vmatpush1.xpose.msra.mxu0 0.0
    %407 = vmatprep.mubr.f32.mxu0 0.0
    %v408 = vand.u32 %v35, 4294901760
    %409 = vmatmul.mubr.f32.gmra.mrb[0].mxu0 %v408
    %v410 = vpop.f32.mrb[0].mxu0
    %v411 = vadd.f32 %v337, %v410
    %v412 = vpop.f32.mrb[0].mxu0
    %413 = vdwg.mxu0
    %414 = vmatprep.subr.mxu0 0.0
    %v415 = vand.u32 %v38, 4294901760
    %416 = vmatpush1.xpose.msra.mxu0 %v415
    %417 = vmatprep.subr.mxu0 0.0
    %418 = vmatpush1.xpose.msra.mxu0 0.0
    %419 = vmatprep.subr.mxu0 0.0
    %420 = vmatpush1.xpose.msra.mxu0 0.0
    %421 = vmatprep.subr.mxu0 0.0
    %422 = vmatpush1.xpose.msra.mxu0 0.0
    %423 = vmatprep.subr.mxu0 0.0
    %424 = vmatpush1.xpose.msra.mxu0 0.0
    %425 = vmatprep.subr.mxu0 0.0
    %426 = vmatpush1.xpose.msra.mxu0 0.0
    %427 = vmatprep.subr.mxu0 0.0
    %428 = vmatpush1.xpose.msra.mxu0 0.0
    %429 = vmatprep.subr.mxu0 0.0
    %430 = vmatpush1.xpose.msra.mxu0 0.0
    %431 = vmatprep.subr.mxu0 0.0
    %432 = vmatpush1.xpose.msra.mxu0 0.0
    %433 = vmatprep.subr.mxu0 0.0
    %434 = vmatpush1.xpose.msra.mxu0 0.0
    %435 = vmatprep.subr.mxu0 0.0
    %436 = vmatpush1.xpose.msra.mxu0 0.0
    %437 = vmatprep.subr.mxu0 0.0
    %438 = vmatpush1.xpose.msra.mxu0 0.0
    %439 = vmatprep.subr.mxu0 0.0
    %440 = vmatpush1.xpose.msra.mxu0 0.0
    %441 = vmatprep.subr.mxu0 0.0
    %442 = vmatpush1.xpose.msra.mxu0 0.0
    %443 = vmatprep.subr.mxu0 0.0
    %444 = vmatpush1.xpose.msra.mxu0 0.0
    %445 = vmatprep.subr.mxu0 0.0
    %446 = vmatpush1.xpose.msra.mxu0 0.0
    %447 = vmatprep.subr.mxu0 0.0
    %448 = vmatpush1.xpose.msra.mxu0 0.0
    %449 = vmatprep.subr.mxu0 0.0
    %450 = vmatpush1.xpose.msra.mxu0 0.0
    %451 = vmatprep.subr.mxu0 0.0
    %452 = vmatpush1.xpose.msra.mxu0 0.0
    %453 = vmatprep.subr.mxu0 0.0
    %454 = vmatpush1.xpose.msra.mxu0 0.0
    %455 = vmatprep.subr.mxu0 0.0
    %456 = vmatpush1.xpose.msra.mxu0 0.0
    %457 = vmatprep.subr.mxu0 0.0
    %458 = vmatpush1.xpose.msra.mxu0 0.0
    %459 = vmatprep.subr.mxu0 0.0
    %460 = vmatpush1.xpose.msra.mxu0 0.0
    %461 = vmatprep.subr.mxu0 0.0
    %462 = vmatpush1.xpose.msra.mxu0 0.0
    %463 = vmatprep.subr.mxu0 0.0
    %464 = vmatpush1.xpose.msra.mxu0 0.0
    %465 = vmatprep.subr.mxu0 0.0
    %466 = vmatpush1.xpose.msra.mxu0 0.0
    %467 = vmatprep.subr.mxu0 0.0
    %468 = vmatpush1.xpose.msra.mxu0 0.0
    %469 = vmatprep.subr.mxu0 0.0
    %470 = vmatpush1.xpose.msra.mxu0 0.0
    %471 = vmatprep.subr.mxu0 0.0
    %472 = vmatpush1.xpose.msra.mxu0 0.0
    %473 = vmatprep.subr.mxu0 0.0
    %474 = vmatpush1.xpose.msra.mxu0 0.0
    %475 = vmatprep.subr.mxu0 0.0
    %476 = vmatpush1.xpose.msra.mxu0 0.0
    %477 = vmatprep.subr.mxu0 0.0
    %478 = vmatpush1.xpose.msra.mxu0 0.0
    %479 = vmatprep.mubr.f32.mxu0 0.0
    %v480 = vand.u32 %v35, 4294901760
    %481 = vmatmul.mubr.f32.gmra.mrb[0].mxu0 %v480
    %v482 = vpop.f32.mrb[0].mxu0
    %v483 = vadd.f32 %v411, %v482
    %v484 = vpop.f32.mrb[0].mxu0
    %485 = vdwg.mxu0
    %v487 = vsel %vm33, %v30, 0
    %489 = vmatprep.subr.mxu0 0.0
    %v490 = vand.u32 %v487, 4294901760
    %491 = vmatpush1.xpose.msra.mxu0 %v490
    %492 = vmatprep.subr.mxu0 0.0
    %493 = vmatpush1.xpose.msra.mxu0 0.0
    %494 = vmatprep.subr.mxu0 0.0
    %495 = vmatpush1.xpose.msra.mxu0 0.0
    %496 = vmatprep.subr.mxu0 0.0
    %497 = vmatpush1.xpose.msra.mxu0 0.0
    %498 = vmatprep.subr.mxu0 0.0
    %499 = vmatpush1.xpose.msra.mxu0 0.0
    %500 = vmatprep.subr.mxu0 0.0
    %501 = vmatpush1.xpose.msra.mxu0 0.0
    %502 = vmatprep.subr.mxu0 0.0
    %503 = vmatpush1.xpose.msra.mxu0 0.0
    %504 = vmatprep.subr.mxu0 0.0
    %505 = vmatpush1.xpose.msra.mxu0 0.0
    %506 = vmatprep.subr.mxu0 0.0
    %507 = vmatpush1.xpose.msra.mxu0 0.0
    %508 = vmatprep.subr.mxu0 0.0
    %509 = vmatpush1.xpose.msra.mxu0 0.0
    %510 = vmatprep.subr.mxu0 0.0
    %511 = vmatpush1.xpose.msra.mxu0 0.0
    %512 = vmatprep.subr.mxu0 0.0
    %513 = vmatpush1.xpose.msra.mxu0 0.0
    %514 = vmatprep.subr.mxu0 0.0
    %515 = vmatpush1.xpose.msra.mxu0 0.0
    %516 = vmatprep.subr.mxu0 0.0
    %517 = vmatpush1.xpose.msra.mxu0 0.0
    %518 = vmatprep.subr.mxu0 0.0
    %519 = vmatpush1.xpose.msra.mxu0 0.0
    %520 = vmatprep.subr.mxu0 0.0
    %521 = vmatpush1.xpose.msra.mxu0 0.0
    %522 = vmatprep.subr.mxu0 0.0
    %523 = vmatpush1.xpose.msra.mxu0 0.0
    %524 = vmatprep.subr.mxu0 0.0
    %525 = vmatpush1.xpose.msra.mxu0 0.0
    %526 = vmatprep.subr.mxu0 0.0
    %527 = vmatpush1.xpose.msra.mxu0 0.0
    %528 = vmatprep.subr.mxu0 0.0
    %529 = vmatpush1.xpose.msra.mxu0 0.0
    %530 = vmatprep.subr.mxu0 0.0
    %531 = vmatpush1.xpose.msra.mxu0 0.0
    %532 = vmatprep.subr.mxu0 0.0
    %533 = vmatpush1.xpose.msra.mxu0 0.0
    %534 = vmatprep.subr.mxu0 0.0
    %535 = vmatpush1.xpose.msra.mxu0 0.0
    %536 = vmatprep.subr.mxu0 0.0
    %537 = vmatpush1.xpose.msra.mxu0 0.0
    %538 = vmatprep.subr.mxu0 0.0
    %539 = vmatpush1.xpose.msra.mxu0 0.0
    %540 = vmatprep.subr.mxu0 0.0
    %541 = vmatpush1.xpose.msra.mxu0 0.0
    %542 = vmatprep.subr.mxu0 0.0
    %543 = vmatpush1.xpose.msra.mxu0 0.0
    %544 = vmatprep.subr.mxu0 0.0
    %545 = vmatpush1.xpose.msra.mxu0 0.0
    %546 = vmatprep.subr.mxu0 0.0
    %547 = vmatpush1.xpose.msra.mxu0 0.0
    %548 = vmatprep.subr.mxu0 0.0
    %549 = vmatpush1.xpose.msra.mxu0 0.0
    %550 = vmatprep.subr.mxu0 0.0
    %551 = vmatpush1.xpose.msra.mxu0 0.0
    %552 = vmatprep.subr.mxu0 0.0
    %553 = vmatpush1.xpose.msra.mxu0 0.0
    %554 = vmatprep.mubr.f32.mxu0 0.0
    %v555 = vand.u32 %v35, 4294901760
    %v556 = vsub.f32 %v35, %v555
    %v557 = vand.u32 %v556, 4294901760
    %v558 = vsub.f32 %v556, %v557
    %v559 = vand.u32 %v558, 4294901760
    %560 = vmatmul.mubr.f32.gmra.mrb[0].mxu0 %v559
    %v561 = vpop.f32.mrb[0].mxu0
    %v562 = vadd.f32 %v32, %v561
    %v563 = vpop.f32.mrb[0].mxu0
    %564 = vdwg.mxu0
    %565 = vmatprep.subr.mxu0 0.0
    %v566 = vand.u32 %v487, 4294901760
    %v567 = vsub.f32 %v487, %v566
    %v568 = vand.u32 %v567, 4294901760
    %v569 = vsub.f32 %v567, %v568
    %v570 = vand.u32 %v569, 4294901760
    %571 = vmatpush1.xpose.msra.mxu0 %v570
    %572 = vmatprep.subr.mxu0 0.0
    %573 = vmatpush1.xpose.msra.mxu0 0.0
    %574 = vmatprep.subr.mxu0 0.0
    %575 = vmatpush1.xpose.msra.mxu0 0.0
    %576 = vmatprep.subr.mxu0 0.0
    %577 = vmatpush1.xpose.msra.mxu0 0.0
    %578 = vmatprep.subr.mxu0 0.0
    %579 = vmatpush1.xpose.msra.mxu0 0.0
    %580 = vmatprep.subr.mxu0 0.0
    %581 = vmatpush1.xpose.msra.mxu0 0.0
    %582 = vmatprep.subr.mxu0 0.0
    %583 = vmatpush1.xpose.msra.mxu0 0.0
    %584 = vmatprep.subr.mxu0 0.0
    %585 = vmatpush1.xpose.msra.mxu0 0.0
    %586 = vmatprep.subr.mxu0 0.0
    %587 = vmatpush1.xpose.msra.mxu0 0.0
    %588 = vmatprep.subr.mxu0 0.0
    %589 = vmatpush1.xpose.msra.mxu0 0.0
    %590 = vmatprep.subr.mxu0 0.0
    %591 = vmatpush1.xpose.msra.mxu0 0.0
    %592 = vmatprep.subr.mxu0 0.0
    %593 = vmatpush1.xpose.msra.mxu0 0.0
    %594 = vmatprep.subr.mxu0 0.0
    %595 = vmatpush1.xpose.msra.mxu0 0.0
    %596 = vmatprep.subr.mxu0 0.0
    %597 = vmatpush1.xpose.msra.mxu0 0.0
    %598 = vmatprep.subr.mxu0 0.0
    %599 = vmatpush1.xpose.msra.mxu0 0.0
    %600 = vmatprep.subr.mxu0 0.0
    %601 = vmatpush1.xpose.msra.mxu0 0.0
    %602 = vmatprep.subr.mxu0 0.0
    %603 = vmatpush1.xpose.msra.mxu0 0.0
    %604 = vmatprep.subr.mxu0 0.0
    %605 = vmatpush1.xpose.msra.mxu0 0.0
    %606 = vmatprep.subr.mxu0 0.0
    %607 = vmatpush1.xpose.msra.mxu0 0.0
    %608 = vmatprep.subr.mxu0 0.0
    %609 = vmatpush1.xpose.msra.mxu0 0.0
    %610 = vmatprep.subr.mxu0 0.0
    %611 = vmatpush1.xpose.msra.mxu0 0.0
    %612 = vmatprep.subr.mxu0 0.0
    %613 = vmatpush1.xpose.msra.mxu0 0.0
    %614 = vmatprep.subr.mxu0 0.0
    %615 = vmatpush1.xpose.msra.mxu0 0.0
    %616 = vmatprep.subr.mxu0 0.0
    %617 = vmatpush1.xpose.msra.mxu0 0.0
    %618 = vmatprep.subr.mxu0 0.0
    %619 = vmatpush1.xpose.msra.mxu0 0.0
    %620 = vmatprep.subr.mxu0 0.0
    %621 = vmatpush1.xpose.msra.mxu0 0.0
    %622 = vmatprep.subr.mxu0 0.0
    %623 = vmatpush1.xpose.msra.mxu0 0.0
    %624 = vmatprep.subr.mxu0 0.0
    %625 = vmatpush1.xpose.msra.mxu0 0.0
    %626 = vmatprep.subr.mxu0 0.0
    %627 = vmatpush1.xpose.msra.mxu0 0.0
    %628 = vmatprep.subr.mxu0 0.0
    %629 = vmatpush1.xpose.msra.mxu0 0.0
    %630 = vmatprep.subr.mxu0 0.0
    %631 = vmatpush1.xpose.msra.mxu0 0.0
    %632 = vmatprep.subr.mxu0 0.0
    %633 = vmatpush1.xpose.msra.mxu0 0.0
    %634 = vmatprep.mubr.f32.mxu0 0.0
    %v635 = vand.u32 %v35, 4294901760
    %636 = vmatmul.mubr.f32.gmra.mrb[0].mxu0 %v635
    %v637 = vpop.f32.mrb[0].mxu0
    %v638 = vadd.f32 %v562, %v637
    %v639 = vpop.f32.mrb[0].mxu0
    %640 = vdwg.mxu0
    %641 = vmatprep.subr.mxu0 0.0
    %v642 = vand.u32 %v487, 4294901760
    %v643 = vsub.f32 %v487, %v642
    %644 = vmatpush1.xpose.msra.mxu0 %v643
    %645 = vmatprep.subr.mxu0 0.0
    %646 = vmatpush1.xpose.msra.mxu0 0.0
    %647 = vmatprep.subr.mxu0 0.0
    %648 = vmatpush1.xpose.msra.mxu0 0.0
    %649 = vmatprep.subr.mxu0 0.0
    %650 = vmatpush1.xpose.msra.mxu0 0.0
    %651 = vmatprep.subr.mxu0 0.0
    %652 = vmatpush1.xpose.msra.mxu0 0.0
    %653 = vmatprep.subr.mxu0 0.0
    %654 = vmatpush1.xpose.msra.mxu0 0.0
    %655 = vmatprep.subr.mxu0 0.0
    %656 = vmatpush1.xpose.msra.mxu0 0.0
    %657 = vmatprep.subr.mxu0 0.0
    %658 = vmatpush1.xpose.msra.mxu0 0.0
    %659 = vmatprep.subr.mxu0 0.0
    %660 = vmatpush1.xpose.msra.mxu0 0.0
    %661 = vmatprep.subr.mxu0 0.0
    %662 = vmatpush1.xpose.msra.mxu0 0.0
    %663 = vmatprep.subr.mxu0 0.0
    %664 = vmatpush1.xpose.msra.mxu0 0.0
    %665 = vmatprep.subr.mxu0 0.0
    %666 = vmatpush1.xpose.msra.mxu0 0.0
    %667 = vmatprep.subr.mxu0 0.0
    %668 = vmatpush1.xpose.msra.mxu0 0.0
    %669 = vmatprep.subr.mxu0 0.0
    %670 = vmatpush1.xpose.msra.mxu0 0.0
    %671 = vmatprep.subr.mxu0 0.0
    %672 = vmatpush1.xpose.msra.mxu0 0.0
    %673 = vmatprep.subr.mxu0 0.0
    %674 = vmatpush1.xpose.msra.mxu0 0.0
    %675 = vmatprep.subr.mxu0 0.0
    %676 = vmatpush1.xpose.msra.mxu0 0.0
    %677 = vmatprep.subr.mxu0 0.0
    %678 = vmatpush1.xpose.msra.mxu0 0.0
    %679 = vmatprep.subr.mxu0 0.0
    %680 = vmatpush1.xpose.msra.mxu0 0.0
    %681 = vmatprep.subr.mxu0 0.0
    %682 = vmatpush1.xpose.msra.mxu0 0.0
    %683 = vmatprep.subr.mxu0 0.0
    %684 = vmatpush1.xpose.msra.mxu0 0.0
    %685 = vmatprep.subr.mxu0 0.0
    %686 = vmatpush1.xpose.msra.mxu0 0.0
    %687 = vmatprep.subr.mxu0 0.0
    %688 = vmatpush1.xpose.msra.mxu0 0.0
    %689 = vmatprep.subr.mxu0 0.0
    %690 = vmatpush1.xpose.msra.mxu0 0.0
    %691 = vmatprep.subr.mxu0 0.0
    %692 = vmatpush1.xpose.msra.mxu0 0.0
    %693 = vmatprep.subr.mxu0 0.0
    %694 = vmatpush1.xpose.msra.mxu0 0.0
    %695 = vmatprep.subr.mxu0 0.0
    %696 = vmatpush1.xpose.msra.mxu0 0.0
    %697 = vmatprep.subr.mxu0 0.0
    %698 = vmatpush1.xpose.msra.mxu0 0.0
    %699 = vmatprep.subr.mxu0 0.0
    %700 = vmatpush1.xpose.msra.mxu0 0.0
    %701 = vmatprep.subr.mxu0 0.0
    %702 = vmatpush1.xpose.msra.mxu0 0.0
    %703 = vmatprep.subr.mxu0 0.0
    %704 = vmatpush1.xpose.msra.mxu0 0.0
    %705 = vmatprep.subr.mxu0 0.0
    %706 = vmatpush1.xpose.msra.mxu0 0.0
    %707 = vmatprep.mubr.f32.mxu0 0.0
    %v708 = vand.u32 %v35, 4294901760
    %v709 = vsub.f32 %v35, %v708
    %710 = vmatmul.mubr.f32.gmra.mrb[0].mxu0 %v709
    %v711 = vpop.f32.mrb[0].mxu0
    %v712 = vadd.f32 %v638, %v711
    %v713 = vpop.f32.mrb[0].mxu0
    %714 = vdwg.mxu0
    %715 = vmatprep.subr.mxu0 0.0
    %v716 = vand.u32 %v487, 4294901760
    %717 = vmatpush1.xpose.msra.mxu0 %v716
    %718 = vmatprep.subr.mxu0 0.0
    %719 = vmatpush1.xpose.msra.mxu0 0.0
    %720 = vmatprep.subr.mxu0 0.0
    %721 = vmatpush1.xpose.msra.mxu0 0.0
    %722 = vmatprep.subr.mxu0 0.0
    %723 = vmatpush1.xpose.msra.mxu0 0.0
    %724 = vmatprep.subr.mxu0 0.0
    %725 = vmatpush1.xpose.msra.mxu0 0.0
    %726 = vmatprep.subr.mxu0 0.0
    %727 = vmatpush1.xpose.msra.mxu0 0.0
    %728 = vmatprep.subr.mxu0 0.0
    %729 = vmatpush1.xpose.msra.mxu0 0.0
    %730 = vmatprep.subr.mxu0 0.0
    %731 = vmatpush1.xpose.msra.mxu0 0.0
    %732 = vmatprep.subr.mxu0 0.0
    %733 = vmatpush1.xpose.msra.mxu0 0.0
    %734 = vmatprep.subr.mxu0 0.0
    %735 = vmatpush1.xpose.msra.mxu0 0.0
    %736 = vmatprep.subr.mxu0 0.0
    %737 = vmatpush1.xpose.msra.mxu0 0.0
    %738 = vmatprep.subr.mxu0 0.0
    %739 = vmatpush1.xpose.msra.mxu0 0.0
    %740 = vmatprep.subr.mxu0 0.0
    %741 = vmatpush1.xpose.msra.mxu0 0.0
    %742 = vmatprep.subr.mxu0 0.0
    %743 = vmatpush1.xpose.msra.mxu0 0.0
    %744 = vmatprep.subr.mxu0 0.0
    %745 = vmatpush1.xpose.msra.mxu0 0.0
    %746 = vmatprep.subr.mxu0 0.0
    %747 = vmatpush1.xpose.msra.mxu0 0.0
    %748 = vmatprep.subr.mxu0 0.0
    %749 = vmatpush1.xpose.msra.mxu0 0.0
    %750 = vmatprep.subr.mxu0 0.0
    %751 = vmatpush1.xpose.msra.mxu0 0.0
    %752 = vmatprep.subr.mxu0 0.0
    %753 = vmatpush1.xpose.msra.mxu0 0.0
    %754 = vmatprep.subr.mxu0 0.0
    %755 = vmatpush1.xpose.msra.mxu0 0.0
    %756 = vmatprep.subr.mxu0 0.0
    %757 = vmatpush1.xpose.msra.mxu0 0.0
    %758 = vmatprep.subr.mxu0 0.0
    %759 = vmatpush1.xpose.msra.mxu0 0.0
    %760 = vmatprep.subr.mxu0 0.0
    %761 = vmatpush1.xpose.msra.mxu0 0.0
    %762 = vmatprep.subr.mxu0 0.0
    %763 = vmatpush1.xpose.msra.mxu0 0.0
    %764 = vmatprep.subr.mxu0 0.0
    %765 = vmatpush1.xpose.msra.mxu0 0.0
    %766 = vmatprep.subr.mxu0 0.0
    %767 = vmatpush1.xpose.msra.mxu0 0.0
    %768 = vmatprep.subr.mxu0 0.0
    %769 = vmatpush1.xpose.msra.mxu0 0.0
    %770 = vmatprep.subr.mxu0 0.0
    %771 = vmatpush1.xpose.msra.mxu0 0.0
    %772 = vmatprep.subr.mxu0 0.0
    %773 = vmatpush1.xpose.msra.mxu0 0.0
    %774 = vmatprep.subr.mxu0 0.0
    %775 = vmatpush1.xpose.msra.mxu0 0.0
    %776 = vmatprep.subr.mxu0 0.0
    %777 = vmatpush1.xpose.msra.mxu0 0.0
    %778 = vmatprep.subr.mxu0 0.0
    %779 = vmatpush1.xpose.msra.mxu0 0.0
    %780 = vmatprep.mubr.f32.mxu0 0.0
    %v781 = vand.u32 %v35, 4294901760
    %v782 = vsub.f32 %v35, %v781
    %v783 = vand.u32 %v782, 4294901760
    %784 = vmatmul.mubr.f32.gmra.mrb[0].mxu0 %v783
    %v785 = vpop.f32.mrb[0].mxu0
    %v786 = vadd.f32 %v712, %v785
    %v787 = vpop.f32.mrb[0].mxu0
    %788 = vdwg.mxu0
    %789 = vmatprep.subr.mxu0 0.0
    %v790 = vand.u32 %v487, 4294901760
    %v791 = vsub.f32 %v487, %v790
    %v792 = vand.u32 %v791, 4294901760
    %793 = vmatpush1.xpose.msra.mxu0 %v792
    %794 = vmatprep.subr.mxu0 0.0
    %795 = vmatpush1.xpose.msra.mxu0 0.0
    %796 = vmatprep.subr.mxu0 0.0
    %797 = vmatpush1.xpose.msra.mxu0 0.0
    %798 = vmatprep.subr.mxu0 0.0
    %799 = vmatpush1.xpose.msra.mxu0 0.0
    %800 = vmatprep.subr.mxu0 0.0
    %801 = vmatpush1.xpose.msra.mxu0 0.0
    %802 = vmatprep.subr.mxu0 0.0
    %803 = vmatpush1.xpose.msra.mxu0 0.0
    %804 = vmatprep.subr.mxu0 0.0
    %805 = vmatpush1.xpose.msra.mxu0 0.0
    %806 = vmatprep.subr.mxu0 0.0
    %807 = vmatpush1.xpose.msra.mxu0 0.0
    %808 = vmatprep.subr.mxu0 0.0
    %809 = vmatpush1.xpose.msra.mxu0 0.0
    %810 = vmatprep.subr.mxu0 0.0
    %811 = vmatpush1.xpose.msra.mxu0 0.0
    %812 = vmatprep.subr.mxu0 0.0
    %813 = vmatpush1.xpose.msra.mxu0 0.0
    %814 = vmatprep.subr.mxu0 0.0
    %815 = vmatpush1.xpose.msra.mxu0 0.0
    %816 = vmatprep.subr.mxu0 0.0
    %817 = vmatpush1.xpose.msra.mxu0 0.0
    %818 = vmatprep.subr.mxu0 0.0
    %819 = vmatpush1.xpose.msra.mxu0 0.0
    %820 = vmatprep.subr.mxu0 0.0
    %821 = vmatpush1.xpose.msra.mxu0 0.0
    %822 = vmatprep.subr.mxu0 0.0
    %823 = vmatpush1.xpose.msra.mxu0 0.0
    %824 = vmatprep.subr.mxu0 0.0
    %825 = vmatpush1.xpose.msra.mxu0 0.0
    %826 = vmatprep.subr.mxu0 0.0
    %827 = vmatpush1.xpose.msra.mxu0 0.0
    %828 = vmatprep.subr.mxu0 0.0
    %829 = vmatpush1.xpose.msra.mxu0 0.0
    %830 = vmatprep.subr.mxu0 0.0
    %831 = vmatpush1.xpose.msra.mxu0 0.0
    %832 = vmatprep.subr.mxu0 0.0
    %833 = vmatpush1.xpose.msra.mxu0 0.0
    %834 = vmatprep.subr.mxu0 0.0
    %835 = vmatpush1.xpose.msra.mxu0 0.0
    %836 = vmatprep.subr.mxu0 0.0
    %837 = vmatpush1.xpose.msra.mxu0 0.0
    %838 = vmatprep.subr.mxu0 0.0
    %839 = vmatpush1.xpose.msra.mxu0 0.0
    %840 = vmatprep.subr.mxu0 0.0
    %841 = vmatpush1.xpose.msra.mxu0 0.0
    %842 = vmatprep.subr.mxu0 0.0
    %843 = vmatpush1.xpose.msra.mxu0 0.0
    %844 = vmatprep.subr.mxu0 0.0
    %845 = vmatpush1.xpose.msra.mxu0 0.0
    %846 = vmatprep.subr.mxu0 0.0
    %847 = vmatpush1.xpose.msra.mxu0 0.0
    %848 = vmatprep.subr.mxu0 0.0
    %849 = vmatpush1.xpose.msra.mxu0 0.0
    %850 = vmatprep.subr.mxu0 0.0
    %851 = vmatpush1.xpose.msra.mxu0 0.0
    %852 = vmatprep.subr.mxu0 0.0
    %853 = vmatpush1.xpose.msra.mxu0 0.0
    %854 = vmatprep.subr.mxu0 0.0
    %855 = vmatpush1.xpose.msra.mxu0 0.0
    %856 = vmatprep.mubr.f32.mxu0 0.0
    %v857 = vand.u32 %v35, 4294901760
    %858 = vmatmul.mubr.f32.gmra.mrb[0].mxu0 %v857
    %v859 = vpop.f32.mrb[0].mxu0
    %v860 = vadd.f32 %v786, %v859
    %v861 = vpop.f32.mrb[0].mxu0
    %862 = vdwg.mxu0
    %863 = vmatprep.subr.mxu0 0.0
    %v864 = vand.u32 %v487, 4294901760
    %865 = vmatpush1.xpose.msra.mxu0 %v864
    %866 = vmatprep.subr.mxu0 0.0
    %867 = vmatpush1.xpose.msra.mxu0 0.0
    %868 = vmatprep.subr.mxu0 0.0
    %869 = vmatpush1.xpose.msra.mxu0 0.0
    %870 = vmatprep.subr.mxu0 0.0
    %871 = vmatpush1.xpose.msra.mxu0 0.0
    %872 = vmatprep.subr.mxu0 0.0
    %873 = vmatpush1.xpose.msra.mxu0 0.0
    %874 = vmatprep.subr.mxu0 0.0
    %875 = vmatpush1.xpose.msra.mxu0 0.0
    %876 = vmatprep.subr.mxu0 0.0
    %877 = vmatpush1.xpose.msra.mxu0 0.0
    %878 = vmatprep.subr.mxu0 0.0
    %879 = vmatpush1.xpose.msra.mxu0 0.0
    %880 = vmatprep.subr.mxu0 0.0
    %881 = vmatpush1.xpose.msra.mxu0 0.0
    %882 = vmatprep.subr.mxu0 0.0
    %883 = vmatpush1.xpose.msra.mxu0 0.0
    %884 = vmatprep.subr.mxu0 0.0
    %885 = vmatpush1.xpose.msra.mxu0 0.0
    %886 = vmatprep.subr.mxu0 0.0
    %887 = vmatpush1.xpose.msra.mxu0 0.0
    %888 = vmatprep.subr.mxu0 0.0
    %889 = vmatpush1.xpose.msra.mxu0 0.0
    %890 = vmatprep.subr.mxu0 0.0
    %891 = vmatpush1.xpose.msra.mxu0 0.0
    %892 = vmatprep.subr.mxu0 0.0
    %893 = vmatpush1.xpose.msra.mxu0 0.0
    %894 = vmatprep.subr.mxu0 0.0
    %895 = vmatpush1.xpose.msra.mxu0 0.0
    %896 = vmatprep.subr.mxu0 0.0
    %897 = vmatpush1.xpose.msra.mxu0 0.0
    %898 = vmatprep.subr.mxu0 0.0
    %899 = vmatpush1.xpose.msra.mxu0 0.0
    %900 = vmatprep.subr.mxu0 0.0
    %901 = vmatpush1.xpose.msra.mxu0 0.0
    %902 = vmatprep.subr.mxu0 0.0
    %903 = vmatpush1.xpose.msra.mxu0 0.0
    %904 = vmatprep.subr.mxu0 0.0
    %905 = vmatpush1.xpose.msra.mxu0 0.0
    %906 = vmatprep.subr.mxu0 0.0
    %907 = vmatpush1.xpose.msra.mxu0 0.0
    %908 = vmatprep.subr.mxu0 0.0
    %909 = vmatpush1.xpose.msra.mxu0 0.0
    %910 = vmatprep.subr.mxu0 0.0
    %911 = vmatpush1.xpose.msra.mxu0 0.0
    %912 = vmatprep.subr.mxu0 0.0
    %913 = vmatpush1.xpose.msra.mxu0 0.0
    %914 = vmatprep.subr.mxu0 0.0
    %915 = vmatpush1.xpose.msra.mxu0 0.0
    %916 = vmatprep.subr.mxu0 0.0
    %917 = vmatpush1.xpose.msra.mxu0 0.0
    %918 = vmatprep.subr.mxu0 0.0
    %919 = vmatpush1.xpose.msra.mxu0 0.0
    %920 = vmatprep.subr.mxu0 0.0
    %921 = vmatpush1.xpose.msra.mxu0 0.0
    %922 = vmatprep.subr.mxu0 0.0
    %923 = vmatpush1.xpose.msra.mxu0 0.0
    %924 = vmatprep.subr.mxu0 0.0
    %925 = vmatpush1.xpose.msra.mxu0 0.0
    %926 = vmatprep.subr.mxu0 0.0
    %927 = vmatpush1.xpose.msra.mxu0 0.0
    %928 = vmatprep.mubr.f32.mxu0 0.0
    %v929 = vand.u32 %v35, 4294901760
    %930 = vmatmul.mubr.f32.gmra.mrb[0].mxu0 %v929
    %v931 = vpop.f32.mrb[0].mxu0
    %v932 = vadd.f32 %v860, %v931
    %v933 = vpop.f32.mrb[0].mxu0
    %934 = vdwg.mxu0
    %v935 = vtanh.pop %v483
    %v936 = vtanh.pop %v932
    %v937 = vmul.f32 %v935, 1.442695
    %v938 = vpow.pop %v937
    %v939 = vmul.f32 %v936, 1.442695
    %v940 = vpow.pop %v939
    %vm941 = vcmask 57344
    %v942 = vsel %vm941, %v938, 0.0
    %943 = vadd.xlane.f32.xlu0 %v942
    %v944 = vpop.xlane.xlu0 %943
    %v945 = vsel %vm941, %v940, 0.0
    %946 = vadd.xlane.f32.xlu0 %v945
    %v947 = vpop.xlane.xlu0 %946
    %v948 = vrcp.pop %v944
    %v949 = vmul.f32 %v938, %v948
    %v950 = vrcp.pop %v947
    %v951 = vmul.f32 %v940, %v950
    %v952 = vadd.f32 %v949, 1e-10
    %v953 = vadd.f32 %v951, 1e-10
    %vm954 = vcmask 64512
    %v956 = vsel %vm954, %v952, 0
    %958 = vmatprep.subr.mxu0 0.0
    %v959 = vand.u32 %v29, 4294901760
    %960 = vmatpush1.msra.mxu0 %v959
    %961 = vmatprep.subr.mxu0 0.0
    %962 = vmatpush1.msra.mxu0 0.0
    %963 = vmatprep.subr.mxu0 0.0
    %964 = vmatpush1.msra.mxu0 0.0
    %965 = vmatprep.subr.mxu0 0.0
    %966 = vmatpush1.msra.mxu0 0.0
    %967 = vmatprep.subr.mxu0 0.0
    %968 = vmatpush1.msra.mxu0 0.0
    %969 = vmatprep.subr.mxu0 0.0
    %970 = vmatpush1.msra.mxu0 0.0
    %971 = vmatprep.subr.mxu0 0.0
    %972 = vmatpush1.msra.mxu0 0.0
    %973 = vmatprep.subr.mxu0 0.0
    %974 = vmatpush1.msra.mxu0 0.0
    %975 = vmatprep.subr.mxu0 0.0
    %976 = vmatpush1.msra.mxu0 0.0
    %977 = vmatprep.subr.mxu0 0.0
    %978 = vmatpush1.msra.mxu0 0.0
    %979 = vmatprep.subr.mxu0 0.0
    %980 = vmatpush1.msra.mxu0 0.0
    %981 = vmatprep.subr.mxu0 0.0
    %982 = vmatpush1.msra.mxu0 0.0
    %983 = vmatprep.subr.mxu0 0.0
    %984 = vmatpush1.msra.mxu0 0.0
    %985 = vmatprep.subr.mxu0 0.0
    %986 = vmatpush1.msra.mxu0 0.0
    %987 = vmatprep.subr.mxu0 0.0
    %988 = vmatpush1.msra.mxu0 0.0
    %989 = vmatprep.subr.mxu0 0.0
    %990 = vmatpush1.msra.mxu0 0.0
    %991 = vmatprep.subr.mxu0 0.0
    %992 = vmatpush1.msra.mxu0 0.0
    %993 = vmatprep.subr.mxu0 0.0
    %994 = vmatpush1.msra.mxu0 0.0
    %995 = vmatprep.subr.mxu0 0.0
    %996 = vmatpush1.msra.mxu0 0.0
    %997 = vmatprep.subr.mxu0 0.0
    %998 = vmatpush1.msra.mxu0 0.0
    %999 = vmatprep.subr.mxu0 0.0
    %1000 = vmatpush1.msra.mxu0 0.0
    %1001 = vmatprep.subr.mxu0 0.0
    %1002 = vmatpush1.msra.mxu0 0.0
    %1003 = vmatprep.subr.mxu0 0.0
    %1004 = vmatpush1.msra.mxu0 0.0
    %1005 = vmatprep.subr.mxu0 0.0
    %1006 = vmatpush1.msra.mxu0 0.0
    %1007 = vmatprep.subr.mxu0 0.0
    %1008 = vmatpush1.msra.mxu0 0.0
    %1009 = vmatprep.subr.mxu0 0.0
    %1010 = vmatpush1.msra.mxu0 0.0
    %1011 = vmatprep.subr.mxu0 0.0
    %1012 = vmatpush1.msra.mxu0 0.0
    %1013 = vmatprep.subr.mxu0 0.0
    %1014 = vmatpush1.msra.mxu0 0.0
    %1015 = vmatprep.subr.mxu0 0.0
    %1016 = vmatpush1.msra.mxu0 0.0
    %1017 = vmatprep.subr.mxu0 0.0
    %1018 = vmatpush1.msra.mxu0 0.0
    %1019 = vmatprep.subr.mxu0 0.0
    %1020 = vmatpush1.msra.mxu0 0.0
    %1021 = vmatprep.subr.mxu0 0.0
    %1022 = vmatpush1.msra.mxu0 0.0
    %1023 = vmatprep.mubr.f32.mxu0 0.0
    %v1024 = vand.u32 %v956, 4294901760
    %v1025 = vsub.f32 %v956, %v1024
    %v1026 = vand.u32 %v1025, 4294901760
    %v1027 = vsub.f32 %v1025, %v1026
    %v1028 = vand.u32 %v1027, 4294901760
    %1029 = vmatmul.mubr.f32.gmra.mrb[0].mxu0 %v1028
    %v1030 = vpop.f32.mrb[0].mxu0
    %v1031 = vadd.f32 0.0, %v1030
    %v1032 = vpop.f32.mrb[0].mxu0
    %1033 = vdwg.mxu0
    %1034 = vmatprep.subr.mxu0 0.0
    %v1035 = vand.u32 %v29, 4294901760
    %v1036 = vsub.f32 %v29, %v1035
    %v1037 = vand.u32 %v1036, 4294901760
    %v1038 = vsub.f32 %v1036, %v1037
    %v1039 = vand.u32 %v1038, 4294901760
    %1040 = vmatpush1.msra.mxu0 %v1039
    %1041 = vmatprep.subr.mxu0 0.0
    %1042 = vmatpush1.msra.mxu0 0.0
    %1043 = vmatprep.subr.mxu0 0.0
    %1044 = vmatpush1.msra.mxu0 0.0
    %1045 = vmatprep.subr.mxu0 0.0
    %1046 = vmatpush1.msra.mxu0 0.0
    %1047 = vmatprep.subr.mxu0 0.0
    %1048 = vmatpush1.msra.mxu0 0.0
    %1049 = vmatprep.subr.mxu0 0.0
    %1050 = vmatpush1.msra.mxu0 0.0
    %1051 = vmatprep.subr.mxu0 0.0
    %1052 = vmatpush1.msra.mxu0 0.0
    %1053 = vmatprep.subr.mxu0 0.0
    %1054 = vmatpush1.msra.mxu0 0.0
    %1055 = vmatprep.subr.mxu0 0.0
    %1056 = vmatpush1.msra.mxu0 0.0
    %1057 = vmatprep.subr.mxu0 0.0
    %1058 = vmatpush1.msra.mxu0 0.0
    %1059 = vmatprep.subr.mxu0 0.0
    %1060 = vmatpush1.msra.mxu0 0.0
    %1061 = vmatprep.subr.mxu0 0.0
    %1062 = vmatpush1.msra.mxu0 0.0
    %1063 = vmatprep.subr.mxu0 0.0
    %1064 = vmatpush1.msra.mxu0 0.0
    %1065 = vmatprep.subr.mxu0 0.0
    %1066 = vmatpush1.msra.mxu0 0.0
    %1067 = vmatprep.subr.mxu0 0.0
    %1068 = vmatpush1.msra.mxu0 0.0
    %1069 = vmatprep.subr.mxu0 0.0
    %1070 = vmatpush1.msra.mxu0 0.0
    %1071 = vmatprep.subr.mxu0 0.0
    %1072 = vmatpush1.msra.mxu0 0.0
    %1073 = vmatprep.subr.mxu0 0.0
    %1074 = vmatpush1.msra.mxu0 0.0
    %1075 = vmatprep.subr.mxu0 0.0
    %1076 = vmatpush1.msra.mxu0 0.0
    %1077 = vmatprep.subr.mxu0 0.0
    %1078 = vmatpush1.msra.mxu0 0.0
    %1079 = vmatprep.subr.mxu0 0.0
    %1080 = vmatpush1.msra.mxu0 0.0
    %1081 = vmatprep.subr.mxu0 0.0
    %1082 = vmatpush1.msra.mxu0 0.0
    %1083 = vmatprep.subr.mxu0 0.0
    %1084 = vmatpush1.msra.mxu0 0.0
    %1085 = vmatprep.subr.mxu0 0.0
    %1086 = vmatpush1.msra.mxu0 0.0
    %1087 = vmatprep.subr.mxu0 0.0
    %1088 = vmatpush1.msra.mxu0 0.0
    %1089 = vmatprep.subr.mxu0 0.0
    %1090 = vmatpush1.msra.mxu0 0.0
    %1091 = vmatprep.subr.mxu0 0.0
    %1092 = vmatpush1.msra.mxu0 0.0
    %1093 = vmatprep.subr.mxu0 0.0
    %1094 = vmatpush1.msra.mxu0 0.0
    %1095 = vmatprep.subr.mxu0 0.0
    %1096 = vmatpush1.msra.mxu0 0.0
    %1097 = vmatprep.subr.mxu0 0.0
    %1098 = vmatpush1.msra.mxu0 0.0
    %1099 = vmatprep.subr.mxu0 0.0
    %1100 = vmatpush1.msra.mxu0 0.0
    %1101 = vmatprep.subr.mxu0 0.0
    %1102 = vmatpush1.msra.mxu0 0.0
    %1103 = vmatprep.mubr.f32.mxu0 0.0
    %v1104 = vand.u32 %v956, 4294901760
    %1105 = vmatmul.mubr.f32.gmra.mrb[0].mxu0 %v1104
    %v1106 = vpop.f32.mrb[0].mxu0
    %v1107 = vadd.f32 %v1031, %v1106
    %v1108 = vpop.f32.mrb[0].mxu0
    %1109 = vdwg.mxu0
    %1110 = vmatprep.subr.mxu0 0.0
    %v1111 = vand.u32 %v29, 4294901760
    %v1112 = vsub.f32 %v29, %v1111
    %1113 = vmatpush1.msra.mxu0 %v1112
    %1114 = vmatprep.subr.mxu0 0.0
    %1115 = vmatpush1.msra.mxu0 0.0
    %1116 = vmatprep.subr.mxu0 0.0
    %1117 = vmatpush1.msra.mxu0 0.0
    %1118 = vmatprep.subr.mxu0 0.0
    %1119 = vmatpush1.msra.mxu0 0.0
    %1120 = vmatprep.subr.mxu0 0.0
    %1121 = vmatpush1.msra.mxu0 0.0
    %1122 = vmatprep.subr.mxu0 0.0
    %1123 = vmatpush1.msra.mxu0 0.0
    %1124 = vmatprep.subr.mxu0 0.0
    %1125 = vmatpush1.msra.mxu0 0.0
    %1126 = vmatprep.subr.mxu0 0.0
    %1127 = vmatpush1.msra.mxu0 0.0
    %1128 = vmatprep.subr.mxu0 0.0
    %1129 = vmatpush1.msra.mxu0 0.0
    %1130 = vmatprep.subr.mxu0 0.0
    %1131 = vmatpush1.msra.mxu0 0.0
    %1132 = vmatprep.subr.mxu0 0.0
    %1133 = vmatpush1.msra.mxu0 0.0
    %1134 = vmatprep.subr.mxu0 0.0
    %1135 = vmatpush1.msra.mxu0 0.0
    %1136 = vmatprep.subr.mxu0 0.0
    %1137 = vmatpush1.msra.mxu0 0.0
    %1138 = vmatprep.subr.mxu0 0.0
    %1139 = vmatpush1.msra.mxu0 0.0
    %1140 = vmatprep.subr.mxu0 0.0
    %1141 = vmatpush1.msra.mxu0 0.0
    %1142 = vmatprep.subr.mxu0 0.0
    %1143 = vmatpush1.msra.mxu0 0.0
    %1144 = vmatprep.subr.mxu0 0.0
    %1145 = vmatpush1.msra.mxu0 0.0
    %1146 = vmatprep.subr.mxu0 0.0
    %1147 = vmatpush1.msra.mxu0 0.0
    %1148 = vmatprep.subr.mxu0 0.0
    %1149 = vmatpush1.msra.mxu0 0.0
    %1150 = vmatprep.subr.mxu0 0.0
    %1151 = vmatpush1.msra.mxu0 0.0
    %1152 = vmatprep.subr.mxu0 0.0
    %1153 = vmatpush1.msra.mxu0 0.0
    %1154 = vmatprep.subr.mxu0 0.0
    %1155 = vmatpush1.msra.mxu0 0.0
    %1156 = vmatprep.subr.mxu0 0.0
    %1157 = vmatpush1.msra.mxu0 0.0
    %1158 = vmatprep.subr.mxu0 0.0
    %1159 = vmatpush1.msra.mxu0 0.0
    %1160 = vmatprep.subr.mxu0 0.0
    %1161 = vmatpush1.msra.mxu0 0.0
    %1162 = vmatprep.subr.mxu0 0.0
    %1163 = vmatpush1.msra.mxu0 0.0
    %1164 = vmatprep.subr.mxu0 0.0
    %1165 = vmatpush1.msra.mxu0 0.0
    %1166 = vmatprep.subr.mxu0 0.0
    %1167 = vmatpush1.msra.mxu0 0.0
    %1168 = vmatprep.subr.mxu0 0.0
    %1169 = vmatpush1.msra.mxu0 0.0
    %1170 = vmatprep.subr.mxu0 0.0
    %1171 = vmatpush1.msra.mxu0 0.0
    %1172 = vmatprep.subr.mxu0 0.0
    %1173 = vmatpush1.msra.mxu0 0.0
    %1174 = vmatprep.subr.mxu0 0.0
    %1175 = vmatpush1.msra.mxu0 0.0
    %1176 = vmatprep.mubr.f32.mxu0 0.0
    %v1177 = vand.u32 %v956, 4294901760
    %v1178 = vsub.f32 %v956, %v1177
    %1179 = vmatmul.mubr.f32.gmra.mrb[0].mxu0 %v1178
    %v1180 = vpop.f32.mrb[0].mxu0
    %v1181 = vadd.f32 %v1107, %v1180
    %v1182 = vpop.f32.mrb[0].mxu0
    %1183 = vdwg.mxu0
    %1184 = vmatprep.subr.mxu0 0.0
    %v1185 = vand.u32 %v29, 4294901760
    %1186 = vmatpush1.msra.mxu0 %v1185
    %1187 = vmatprep.subr.mxu0 0.0
    %1188 = vmatpush1.msra.mxu0 0.0
    %1189 = vmatprep.subr.mxu0 0.0
    %1190 = vmatpush1.msra.mxu0 0.0
    %1191 = vmatprep.subr.mxu0 0.0
    %1192 = vmatpush1.msra.mxu0 0.0
    %1193 = vmatprep.subr.mxu0 0.0
    %1194 = vmatpush1.msra.mxu0 0.0
    %1195 = vmatprep.subr.mxu0 0.0
    %1196 = vmatpush1.msra.mxu0 0.0
    %1197 = vmatprep.subr.mxu0 0.0
    %1198 = vmatpush1.msra.mxu0 0.0
    %1199 = vmatprep.subr.mxu0 0.0
    %1200 = vmatpush1.msra.mxu0 0.0
    %1201 = vmatprep.subr.mxu0 0.0
    %1202 = vmatpush1.msra.mxu0 0.0
    %1203 = vmatprep.subr.mxu0 0.0
    %1204 = vmatpush1.msra.mxu0 0.0
    %1205 = vmatprep.subr.mxu0 0.0
    %1206 = vmatpush1.msra.mxu0 0.0
    %1207 = vmatprep.subr.mxu0 0.0
    %1208 = vmatpush1.msra.mxu0 0.0
    %1209 = vmatprep.subr.mxu0 0.0
    %1210 = vmatpush1.msra.mxu0 0.0
    %1211 = vmatprep.subr.mxu0 0.0
    %1212 = vmatpush1.msra.mxu0 0.0
    %1213 = vmatprep.subr.mxu0 0.0
    %1214 = vmatpush1.msra.mxu0 0.0
    %1215 = vmatprep.subr.mxu0 0.0
    %1216 = vmatpush1.msra.mxu0 0.0
    %1217 = vmatprep.subr.mxu0 0.0
    %1218 = vmatpush1.msra.mxu0 0.0
    %1219 = vmatprep.subr.mxu0 0.0
    %1220 = vmatpush1.msra.mxu0 0.0
    %1221 = vmatprep.subr.mxu0 0.0
    %1222 = vmatpush1.msra.mxu0 0.0
    %1223 = vmatprep.subr.mxu0 0.0
    %1224 = vmatpush1.msra.mxu0 0.0
    %1225 = vmatprep.subr.mxu0 0.0
    %1226 = vmatpush1.msra.mxu0 0.0
    %1227 = vmatprep.subr.mxu0 0.0
    %1228 = vmatpush1.msra.mxu0 0.0
    %1229 = vmatprep.subr.mxu0 0.0
    %1230 = vmatpush1.msra.mxu0 0.0
    %1231 = vmatprep.subr.mxu0 0.0
    %1232 = vmatpush1.msra.mxu0 0.0
    %1233 = vmatprep.subr.mxu0 0.0
    %1234 = vmatpush1.msra.mxu0 0.0
    %1235 = vmatprep.subr.mxu0 0.0
    %1236 = vmatpush1.msra.mxu0 0.0
    %1237 = vmatprep.subr.mxu0 0.0
    %1238 = vmatpush1.msra.mxu0 0.0
    %1239 = vmatprep.subr.mxu0 0.0
    %1240 = vmatpush1.msra.mxu0 0.0
    %1241 = vmatprep.subr.mxu0 0.0
    %1242 = vmatpush1.msra.mxu0 0.0
    %1243 = vmatprep.subr.mxu0 0.0
    %1244 = vmatpush1.msra.mxu0 0.0
    %1245 = vmatprep.subr.mxu0 0.0
    %1246 = vmatpush1.msra.mxu0 0.0
    %1247 = vmatprep.subr.mxu0 0.0
    %1248 = vmatpush1.msra.mxu0 0.0
    %1249 = vmatprep.mubr.f32.mxu0 0.0
    %v1250 = vand.u32 %v956, 4294901760
    %v1251 = vsub.f32 %v956, %v1250
    %v1252 = vand.u32 %v1251, 4294901760
    %1253 = vmatmul.mubr.f32.gmra.mrb[0].mxu0 %v1252
    %v1254 = vpop.f32.mrb[0].mxu0
    %v1255 = vadd.f32 %v1181, %v1254
    %v1256 = vpop.f32.mrb[0].mxu0
    %1257 = vdwg.mxu0
    %1258 = vmatprep.subr.mxu0 0.0
    %v1259 = vand.u32 %v29, 4294901760
    %v1260 = vsub.f32 %v29, %v1259
    %v1261 = vand.u32 %v1260, 4294901760
    %1262 = vmatpush1.msra.mxu0 %v1261
    %1263 = vmatprep.subr.mxu0 0.0
    %1264 = vmatpush1.msra.mxu0 0.0
    %1265 = vmatprep.subr.mxu0 0.0
    %1266 = vmatpush1.msra.mxu0 0.0
    %1267 = vmatprep.subr.mxu0 0.0
    %1268 = vmatpush1.msra.mxu0 0.0
    %1269 = vmatprep.subr.mxu0 0.0
    %1270 = vmatpush1.msra.mxu0 0.0
    %1271 = vmatprep.subr.mxu0 0.0
    %1272 = vmatpush1.msra.mxu0 0.0
    %1273 = vmatprep.subr.mxu0 0.0
    %1274 = vmatpush1.msra.mxu0 0.0
    %1275 = vmatprep.subr.mxu0 0.0
    %1276 = vmatpush1.msra.mxu0 0.0
    %1277 = vmatprep.subr.mxu0 0.0
    %1278 = vmatpush1.msra.mxu0 0.0
    %1279 = vmatprep.subr.mxu0 0.0
    %1280 = vmatpush1.msra.mxu0 0.0
    %1281 = vmatprep.subr.mxu0 0.0
    %1282 = vmatpush1.msra.mxu0 0.0
    %1283 = vmatprep.subr.mxu0 0.0
    %1284 = vmatpush1.msra.mxu0 0.0
    %1285 = vmatprep.subr.mxu0 0.0
    %1286 = vmatpush1.msra.mxu0 0.0
    %1287 = vmatprep.subr.mxu0 0.0
    %1288 = vmatpush1.msra.mxu0 0.0
    %1289 = vmatprep.subr.mxu0 0.0
    %1290 = vmatpush1.msra.mxu0 0.0
    %1291 = vmatprep.subr.mxu0 0.0
    %1292 = vmatpush1.msra.mxu0 0.0
    %1293 = vmatprep.subr.mxu0 0.0
    %1294 = vmatpush1.msra.mxu0 0.0
    %1295 = vmatprep.subr.mxu0 0.0
    %1296 = vmatpush1.msra.mxu0 0.0
    %1297 = vmatprep.subr.mxu0 0.0
    %1298 = vmatpush1.msra.mxu0 0.0
    %1299 = vmatprep.subr.mxu0 0.0
    %1300 = vmatpush1.msra.mxu0 0.0
    %1301 = vmatprep.subr.mxu0 0.0
    %1302 = vmatpush1.msra.mxu0 0.0
    %1303 = vmatprep.subr.mxu0 0.0
    %1304 = vmatpush1.msra.mxu0 0.0
    %1305 = vmatprep.subr.mxu0 0.0
    %1306 = vmatpush1.msra.mxu0 0.0
    %1307 = vmatprep.subr.mxu0 0.0
    %1308 = vmatpush1.msra.mxu0 0.0
    %1309 = vmatprep.subr.mxu0 0.0
    %1310 = vmatpush1.msra.mxu0 0.0
    %1311 = vmatprep.subr.mxu0 0.0
    %1312 = vmatpush1.msra.mxu0 0.0
    %1313 = vmatprep.subr.mxu0 0.0
    %1314 = vmatpush1.msra.mxu0 0.0
    %1315 = vmatprep.subr.mxu0 0.0
    %1316 = vmatpush1.msra.mxu0 0.0
    %1317 = vmatprep.subr.mxu0 0.0
    %1318 = vmatpush1.msra.mxu0 0.0
    %1319 = vmatprep.subr.mxu0 0.0
    %1320 = vmatpush1.msra.mxu0 0.0
    %1321 = vmatprep.subr.mxu0 0.0
    %1322 = vmatpush1.msra.mxu0 0.0
    %1323 = vmatprep.subr.mxu0 0.0
    %1324 = vmatpush1.msra.mxu0 0.0
    %1325 = vmatprep.mubr.f32.mxu0 0.0
    %v1326 = vand.u32 %v956, 4294901760
    %1327 = vmatmul.mubr.f32.gmra.mrb[0].mxu0 %v1326
    %v1328 = vpop.f32.mrb[0].mxu0
    %v1329 = vadd.f32 %v1255, %v1328
    %v1330 = vpop.f32.mrb[0].mxu0
    %1331 = vdwg.mxu0
    %1332 = vmatprep.subr.mxu0 0.0
    %v1333 = vand.u32 %v29, 4294901760
    %1334 = vmatpush1.msra.mxu0 %v1333
    %1335 = vmatprep.subr.mxu0 0.0
    %1336 = vmatpush1.msra.mxu0 0.0
    %1337 = vmatprep.subr.mxu0 0.0
    %1338 = vmatpush1.msra.mxu0 0.0
    %1339 = vmatprep.subr.mxu0 0.0
    %1340 = vmatpush1.msra.mxu0 0.0
    %1341 = vmatprep.subr.mxu0 0.0
    %1342 = vmatpush1.msra.mxu0 0.0
    %1343 = vmatprep.subr.mxu0 0.0
    %1344 = vmatpush1.msra.mxu0 0.0
    %1345 = vmatprep.subr.mxu0 0.0
    %1346 = vmatpush1.msra.mxu0 0.0
    %1347 = vmatprep.subr.mxu0 0.0
    %1348 = vmatpush1.msra.mxu0 0.0
    %1349 = vmatprep.subr.mxu0 0.0
    %1350 = vmatpush1.msra.mxu0 0.0
    %1351 = vmatprep.subr.mxu0 0.0
    %1352 = vmatpush1.msra.mxu0 0.0
    %1353 = vmatprep.subr.mxu0 0.0
    %1354 = vmatpush1.msra.mxu0 0.0
    %1355 = vmatprep.subr.mxu0 0.0
    %1356 = vmatpush1.msra.mxu0 0.0
    %1357 = vmatprep.subr.mxu0 0.0
    %1358 = vmatpush1.msra.mxu0 0.0
    %1359 = vmatprep.subr.mxu0 0.0
    %1360 = vmatpush1.msra.mxu0 0.0
    %1361 = vmatprep.subr.mxu0 0.0
    %1362 = vmatpush1.msra.mxu0 0.0
    %1363 = vmatprep.subr.mxu0 0.0
    %1364 = vmatpush1.msra.mxu0 0.0
    %1365 = vmatprep.subr.mxu0 0.0
    %1366 = vmatpush1.msra.mxu0 0.0
    %1367 = vmatprep.subr.mxu0 0.0
    %1368 = vmatpush1.msra.mxu0 0.0
    %1369 = vmatprep.subr.mxu0 0.0
    %1370 = vmatpush1.msra.mxu0 0.0
    %1371 = vmatprep.subr.mxu0 0.0
    %1372 = vmatpush1.msra.mxu0 0.0
    %1373 = vmatprep.subr.mxu0 0.0
    %1374 = vmatpush1.msra.mxu0 0.0
    %1375 = vmatprep.subr.mxu0 0.0
    %1376 = vmatpush1.msra.mxu0 0.0
    %1377 = vmatprep.subr.mxu0 0.0
    %1378 = vmatpush1.msra.mxu0 0.0
    %1379 = vmatprep.subr.mxu0 0.0
    %1380 = vmatpush1.msra.mxu0 0.0
    %1381 = vmatprep.subr.mxu0 0.0
    %1382 = vmatpush1.msra.mxu0 0.0
    %1383 = vmatprep.subr.mxu0 0.0
    %1384 = vmatpush1.msra.mxu0 0.0
    %1385 = vmatprep.subr.mxu0 0.0
    %1386 = vmatpush1.msra.mxu0 0.0
    %1387 = vmatprep.subr.mxu0 0.0
    %1388 = vmatpush1.msra.mxu0 0.0
    %1389 = vmatprep.subr.mxu0 0.0
    %1390 = vmatpush1.msra.mxu0 0.0
    %1391 = vmatprep.subr.mxu0 0.0
    %1392 = vmatpush1.msra.mxu0 0.0
    %1393 = vmatprep.subr.mxu0 0.0
    %1394 = vmatpush1.msra.mxu0 0.0
    %1395 = vmatprep.subr.mxu0 0.0
    %1396 = vmatpush1.msra.mxu0 0.0
    %1397 = vmatprep.mubr.f32.mxu0 0.0
    %v1398 = vand.u32 %v956, 4294901760
    %1399 = vmatmul.mubr.f32.gmra.mrb[0].mxu0 %v1398
    %v1400 = vpop.f32.mrb[0].mxu0
    %v1401 = vadd.f32 %v1329, %v1400
    %v1402 = vpop.f32.mrb[0].mxu0
    %1403 = vdwg.mxu0
    %v1405 = vsel %vm954, %v953, 0
    %1407 = vmatprep.subr.mxu0 0.0
    %v1408 = vand.u32 %v30, 4294901760
    %1409 = vmatpush1.msra.mxu0 %v1408
    %1410 = vmatprep.subr.mxu0 0.0
    %1411 = vmatpush1.msra.mxu0 0.0
    %1412 = vmatprep.subr.mxu0 0.0
    %1413 = vmatpush1.msra.mxu0 0.0
    %1414 = vmatprep.subr.mxu0 0.0
    %1415 = vmatpush1.msra.mxu0 0.0
    %1416 = vmatprep.subr.mxu0 0.0
    %1417 = vmatpush1.msra.mxu0 0.0
    %1418 = vmatprep.subr.mxu0 0.0
    %1419 = vmatpush1.msra.mxu0 0.0
    %1420 = vmatprep.subr.mxu0 0.0
    %1421 = vmatpush1.msra.mxu0 0.0
    %1422 = vmatprep.subr.mxu0 0.0
    %1423 = vmatpush1.msra.mxu0 0.0
    %1424 = vmatprep.subr.mxu0 0.0
    %1425 = vmatpush1.msra.mxu0 0.0
    %1426 = vmatprep.subr.mxu0 0.0
    %1427 = vmatpush1.msra.mxu0 0.0
    %1428 = vmatprep.subr.mxu0 0.0
    %1429 = vmatpush1.msra.mxu0 0.0
    %1430 = vmatprep.subr.mxu0 0.0
    %1431 = vmatpush1.msra.mxu0 0.0
    %1432 = vmatprep.subr.mxu0 0.0
    %1433 = vmatpush1.msra.mxu0 0.0
    %1434 = vmatprep.subr.mxu0 0.0
    %1435 = vmatpush1.msra.mxu0 0.0
    %1436 = vmatprep.subr.mxu0 0.0
    %1437 = vmatpush1.msra.mxu0 0.0
    %1438 = vmatprep.subr.mxu0 0.0
    %1439 = vmatpush1.msra.mxu0 0.0
    %1440 = vmatprep.subr.mxu0 0.0
    %1441 = vmatpush1.msra.mxu0 0.0
    %1442 = vmatprep.subr.mxu0 0.0
    %1443 = vmatpush1.msra.mxu0 0.0
    %1444 = vmatprep.subr.mxu0 0.0
    %1445 = vmatpush1.msra.mxu0 0.0
    %1446 = vmatprep.subr.mxu0 0.0
    %1447 = vmatpush1.msra.mxu0 0.0
    %1448 = vmatprep.subr.mxu0 0.0
    %1449 = vmatpush1.msra.mxu0 0.0
    %1450 = vmatprep.subr.mxu0 0.0
    %1451 = vmatpush1.msra.mxu0 0.0
    %1452 = vmatprep.subr.mxu0 0.0
    %1453 = vmatpush1.msra.mxu0 0.0
    %1454 = vmatprep.subr.mxu0 0.0
    %1455 = vmatpush1.msra.mxu0 0.0
    %1456 = vmatprep.subr.mxu0 0.0
    %1457 = vmatpush1.msra.mxu0 0.0
    %1458 = vmatprep.subr.mxu0 0.0
    %1459 = vmatpush1.msra.mxu0 0.0
    %1460 = vmatprep.subr.mxu0 0.0
    %1461 = vmatpush1.msra.mxu0 0.0
    %1462 = vmatprep.subr.mxu0 0.0
    %1463 = vmatpush1.msra.mxu0 0.0
    %1464 = vmatprep.subr.mxu0 0.0
    %1465 = vmatpush1.msra.mxu0 0.0
    %1466 = vmatprep.subr.mxu0 0.0
    %1467 = vmatpush1.msra.mxu0 0.0
    %1468 = vmatprep.subr.mxu0 0.0
    %1469 = vmatpush1.msra.mxu0 0.0
    %1470 = vmatprep.subr.mxu0 0.0
    %1471 = vmatpush1.msra.mxu0 0.0
    %1472 = vmatprep.mubr.f32.mxu0 0.0
    %v1473 = vand.u32 %v1405, 4294901760
    %v1474 = vsub.f32 %v1405, %v1473
    %v1475 = vand.u32 %v1474, 4294901760
    %v1476 = vsub.f32 %v1474, %v1475
    %v1477 = vand.u32 %v1476, 4294901760
    %1478 = vmatmul.mubr.f32.gmra.mrb[0].mxu0 %v1477
    %v1479 = vpop.f32.mrb[0].mxu0
    %v1480 = vadd.f32 0.0, %v1479
    %v1481 = vpop.f32.mrb[0].mxu0
    %1482 = vdwg.mxu0
    %1483 = vmatprep.subr.mxu0 0.0
    %v1484 = vand.u32 %v30, 4294901760
    %v1485 = vsub.f32 %v30, %v1484
    %v1486 = vand.u32 %v1485, 4294901760
    %v1487 = vsub.f32 %v1485, %v1486
    %v1488 = vand.u32 %v1487, 4294901760
    %1489 = vmatpush1.msra.mxu0 %v1488
    %1490 = vmatprep.subr.mxu0 0.0
    %1491 = vmatpush1.msra.mxu0 0.0
    %1492 = vmatprep.subr.mxu0 0.0
    %1493 = vmatpush1.msra.mxu0 0.0
    %1494 = vmatprep.subr.mxu0 0.0
    %1495 = vmatpush1.msra.mxu0 0.0
    %1496 = vmatprep.subr.mxu0 0.0
    %1497 = vmatpush1.msra.mxu0 0.0
    %1498 = vmatprep.subr.mxu0 0.0
    %1499 = vmatpush1.msra.mxu0 0.0
    %1500 = vmatprep.subr.mxu0 0.0
    %1501 = vmatpush1.msra.mxu0 0.0
    %1502 = vmatprep.subr.mxu0 0.0
    %1503 = vmatpush1.msra.mxu0 0.0
    %1504 = vmatprep.subr.mxu0 0.0
    %1505 = vmatpush1.msra.mxu0 0.0
    %1506 = vmatprep.subr.mxu0 0.0
    %1507 = vmatpush1.msra.mxu0 0.0
    %1508 = vmatprep.subr.mxu0 0.0
    %1509 = vmatpush1.msra.mxu0 0.0
    %1510 = vmatprep.subr.mxu0 0.0
    %1511 = vmatpush1.msra.mxu0 0.0
    %1512 = vmatprep.subr.mxu0 0.0
    %1513 = vmatpush1.msra.mxu0 0.0
    %1514 = vmatprep.subr.mxu0 0.0
    %1515 = vmatpush1.msra.mxu0 0.0
    %1516 = vmatprep.subr.mxu0 0.0
    %1517 = vmatpush1.msra.mxu0 0.0
    %1518 = vmatprep.subr.mxu0 0.0
    %1519 = vmatpush1.msra.mxu0 0.0
    %1520 = vmatprep.subr.mxu0 0.0
    %1521 = vmatpush1.msra.mxu0 0.0
    %1522 = vmatprep.subr.mxu0 0.0
    %1523 = vmatpush1.msra.mxu0 0.0
    %1524 = vmatprep.subr.mxu0 0.0
    %1525 = vmatpush1.msra.mxu0 0.0
    %1526 = vmatprep.subr.mxu0 0.0
    %1527 = vmatpush1.msra.mxu0 0.0
    %1528 = vmatprep.subr.mxu0 0.0
    %1529 = vmatpush1.msra.mxu0 0.0
    %1530 = vmatprep.subr.mxu0 0.0
    %1531 = vmatpush1.msra.mxu0 0.0
    %1532 = vmatprep.subr.mxu0 0.0
    %1533 = vmatpush1.msra.mxu0 0.0
    %1534 = vmatprep.subr.mxu0 0.0
    %1535 = vmatpush1.msra.mxu0 0.0
    %1536 = vmatprep.subr.mxu0 0.0
    %1537 = vmatpush1.msra.mxu0 0.0
    %1538 = vmatprep.subr.mxu0 0.0
    %1539 = vmatpush1.msra.mxu0 0.0
    %1540 = vmatprep.subr.mxu0 0.0
    %1541 = vmatpush1.msra.mxu0 0.0
    %1542 = vmatprep.subr.mxu0 0.0
    %1543 = vmatpush1.msra.mxu0 0.0
    %1544 = vmatprep.subr.mxu0 0.0
    %1545 = vmatpush1.msra.mxu0 0.0
    %1546 = vmatprep.subr.mxu0 0.0
    %1547 = vmatpush1.msra.mxu0 0.0
    %1548 = vmatprep.subr.mxu0 0.0
    %1549 = vmatpush1.msra.mxu0 0.0
    %1550 = vmatprep.subr.mxu0 0.0
    %1551 = vmatpush1.msra.mxu0 0.0
    %1552 = vmatprep.mubr.f32.mxu0 0.0
    %v1553 = vand.u32 %v1405, 4294901760
    %1554 = vmatmul.mubr.f32.gmra.mrb[0].mxu0 %v1553
    %v1555 = vpop.f32.mrb[0].mxu0
    %v1556 = vadd.f32 %v1480, %v1555
    %v1557 = vpop.f32.mrb[0].mxu0
    %1558 = vdwg.mxu0
    %1559 = vmatprep.subr.mxu0 0.0
    %v1560 = vand.u32 %v30, 4294901760
    %v1561 = vsub.f32 %v30, %v1560
    %1562 = vmatpush1.msra.mxu0 %v1561
    %1563 = vmatprep.subr.mxu0 0.0
    %1564 = vmatpush1.msra.mxu0 0.0
    %1565 = vmatprep.subr.mxu0 0.0
    %1566 = vmatpush1.msra.mxu0 0.0
    %1567 = vmatprep.subr.mxu0 0.0
    %1568 = vmatpush1.msra.mxu0 0.0
    %1569 = vmatprep.subr.mxu0 0.0
    %1570 = vmatpush1.msra.mxu0 0.0
    %1571 = vmatprep.subr.mxu0 0.0
    %1572 = vmatpush1.msra.mxu0 0.0
    %1573 = vmatprep.subr.mxu0 0.0
    %1574 = vmatpush1.msra.mxu0 0.0
    %1575 = vmatprep.subr.mxu0 0.0
    %1576 = vmatpush1.msra.mxu0 0.0
    %1577 = vmatprep.subr.mxu0 0.0
    %1578 = vmatpush1.msra.mxu0 0.0
    %1579 = vmatprep.subr.mxu0 0.0
    %1580 = vmatpush1.msra.mxu0 0.0
    %1581 = vmatprep.subr.mxu0 0.0
    %1582 = vmatpush1.msra.mxu0 0.0
    %1583 = vmatprep.subr.mxu0 0.0
    %1584 = vmatpush1.msra.mxu0 0.0
    %1585 = vmatprep.subr.mxu0 0.0
    %1586 = vmatpush1.msra.mxu0 0.0
    %1587 = vmatprep.subr.mxu0 0.0
    %1588 = vmatpush1.msra.mxu0 0.0
    %1589 = vmatprep.subr.mxu0 0.0
    %1590 = vmatpush1.msra.mxu0 0.0
    %1591 = vmatprep.subr.mxu0 0.0
    %1592 = vmatpush1.msra.mxu0 0.0
    %1593 = vmatprep.subr.mxu0 0.0
    %1594 = vmatpush1.msra.mxu0 0.0
    %1595 = vmatprep.subr.mxu0 0.0
    %1596 = vmatpush1.msra.mxu0 0.0
    %1597 = vmatprep.subr.mxu0 0.0
    %1598 = vmatpush1.msra.mxu0 0.0
    %1599 = vmatprep.subr.mxu0 0.0
    %1600 = vmatpush1.msra.mxu0 0.0
    %1601 = vmatprep.subr.mxu0 0.0
    %1602 = vmatpush1.msra.mxu0 0.0
    %1603 = vmatprep.subr.mxu0 0.0
    %1604 = vmatpush1.msra.mxu0 0.0
    %1605 = vmatprep.subr.mxu0 0.0
    %1606 = vmatpush1.msra.mxu0 0.0
    %1607 = vmatprep.subr.mxu0 0.0
    %1608 = vmatpush1.msra.mxu0 0.0
    %1609 = vmatprep.subr.mxu0 0.0
    %1610 = vmatpush1.msra.mxu0 0.0
    %1611 = vmatprep.subr.mxu0 0.0
    %1612 = vmatpush1.msra.mxu0 0.0
    %1613 = vmatprep.subr.mxu0 0.0
    %1614 = vmatpush1.msra.mxu0 0.0
    %1615 = vmatprep.subr.mxu0 0.0
    %1616 = vmatpush1.msra.mxu0 0.0
    %1617 = vmatprep.subr.mxu0 0.0
    %1618 = vmatpush1.msra.mxu0 0.0
    %1619 = vmatprep.subr.mxu0 0.0
    %1620 = vmatpush1.msra.mxu0 0.0
    %1621 = vmatprep.subr.mxu0 0.0
    %1622 = vmatpush1.msra.mxu0 0.0
    %1623 = vmatprep.subr.mxu0 0.0
    %1624 = vmatpush1.msra.mxu0 0.0
    %1625 = vmatprep.mubr.f32.mxu0 0.0
    %v1626 = vand.u32 %v1405, 4294901760
    %v1627 = vsub.f32 %v1405, %v1626
    %1628 = vmatmul.mubr.f32.gmra.mrb[0].mxu0 %v1627
    %v1629 = vpop.f32.mrb[0].mxu0
    %v1630 = vadd.f32 %v1556, %v1629
    %v1631 = vpop.f32.mrb[0].mxu0
    %1632 = vdwg.mxu0
    %1633 = vmatprep.subr.mxu0 0.0
    %v1634 = vand.u32 %v30, 4294901760
    %1635 = vmatpush1.msra.mxu0 %v1634
    %1636 = vmatprep.subr.mxu0 0.0
    %1637 = vmatpush1.msra.mxu0 0.0
    %1638 = vmatprep.subr.mxu0 0.0
    %1639 = vmatpush1.msra.mxu0 0.0
    %1640 = vmatprep.subr.mxu0 0.0
    %1641 = vmatpush1.msra.mxu0 0.0
    %1642 = vmatprep.subr.mxu0 0.0
    %1643 = vmatpush1.msra.mxu0 0.0
    %1644 = vmatprep.subr.mxu0 0.0
    %1645 = vmatpush1.msra.mxu0 0.0
    %1646 = vmatprep.subr.mxu0 0.0
    %1647 = vmatpush1.msra.mxu0 0.0
    %1648 = vmatprep.subr.mxu0 0.0
    %1649 = vmatpush1.msra.mxu0 0.0
    %1650 = vmatprep.subr.mxu0 0.0
    %1651 = vmatpush1.msra.mxu0 0.0
    %1652 = vmatprep.subr.mxu0 0.0
    %1653 = vmatpush1.msra.mxu0 0.0
    %1654 = vmatprep.subr.mxu0 0.0
    %1655 = vmatpush1.msra.mxu0 0.0
    %1656 = vmatprep.subr.mxu0 0.0
    %1657 = vmatpush1.msra.mxu0 0.0
    %1658 = vmatprep.subr.mxu0 0.0
    %1659 = vmatpush1.msra.mxu0 0.0
    %1660 = vmatprep.subr.mxu0 0.0
    %1661 = vmatpush1.msra.mxu0 0.0
    %1662 = vmatprep.subr.mxu0 0.0
    %1663 = vmatpush1.msra.mxu0 0.0
    %1664 = vmatprep.subr.mxu0 0.0
    %1665 = vmatpush1.msra.mxu0 0.0
    %1666 = vmatprep.subr.mxu0 0.0
    %1667 = vmatpush1.msra.mxu0 0.0
    %1668 = vmatprep.subr.mxu0 0.0
    %1669 = vmatpush1.msra.mxu0 0.0
    %1670 = vmatprep.subr.mxu0 0.0
    %1671 = vmatpush1.msra.mxu0 0.0
    %1672 = vmatprep.subr.mxu0 0.0
    %1673 = vmatpush1.msra.mxu0 0.0
    %1674 = vmatprep.subr.mxu0 0.0
    %1675 = vmatpush1.msra.mxu0 0.0
    %1676 = vmatprep.subr.mxu0 0.0
    %1677 = vmatpush1.msra.mxu0 0.0
    %1678 = vmatprep.subr.mxu0 0.0
    %1679 = vmatpush1.msra.mxu0 0.0
    %1680 = vmatprep.subr.mxu0 0.0
    %1681 = vmatpush1.msra.mxu0 0.0
    %1682 = vmatprep.subr.mxu0 0.0
    %1683 = vmatpush1.msra.mxu0 0.0
    %1684 = vmatprep.subr.mxu0 0.0
    %1685 = vmatpush1.msra.mxu0 0.0
    %1686 = vmatprep.subr.mxu0 0.0
    %1687 = vmatpush1.msra.mxu0 0.0
    %1688 = vmatprep.subr.mxu0 0.0
    %1689 = vmatpush1.msra.mxu0 0.0
    %1690 = vmatprep.subr.mxu0 0.0
    %1691 = vmatpush1.msra.mxu0 0.0
    %1692 = vmatprep.subr.mxu0 0.0
    %1693 = vmatpush1.msra.mxu0 0.0
    %1694 = vmatprep.subr.mxu0 0.0
    %1695 = vmatpush1.msra.mxu0 0.0
    %1696 = vmatprep.subr.mxu0 0.0
    %1697 = vmatpush1.msra.mxu0 0.0
    %1698 = vmatprep.mubr.f32.mxu0 0.0
    %v1699 = vand.u32 %v1405, 4294901760
    %v1700 = vsub.f32 %v1405, %v1699
    %v1701 = vand.u32 %v1700, 4294901760
    %1702 = vmatmul.mubr.f32.gmra.mrb[0].mxu0 %v1701
    %v1703 = vpop.f32.mrb[0].mxu0
    %v1704 = vadd.f32 %v1630, %v1703
    %v1705 = vpop.f32.mrb[0].mxu0
    %1706 = vdwg.mxu0
    %1707 = vmatprep.subr.mxu0 0.0
    %v1708 = vand.u32 %v30, 4294901760
    %v1709 = vsub.f32 %v30, %v1708
    %v1710 = vand.u32 %v1709, 4294901760
    %1711 = vmatpush1.msra.mxu0 %v1710
    %1712 = vmatprep.subr.mxu0 0.0
    %1713 = vmatpush1.msra.mxu0 0.0
    %1714 = vmatprep.subr.mxu0 0.0
    %1715 = vmatpush1.msra.mxu0 0.0
    %1716 = vmatprep.subr.mxu0 0.0
    %1717 = vmatpush1.msra.mxu0 0.0
    %1718 = vmatprep.subr.mxu0 0.0
    %1719 = vmatpush1.msra.mxu0 0.0
    %1720 = vmatprep.subr.mxu0 0.0
    %1721 = vmatpush1.msra.mxu0 0.0
    %1722 = vmatprep.subr.mxu0 0.0
    %1723 = vmatpush1.msra.mxu0 0.0
    %1724 = vmatprep.subr.mxu0 0.0
    %1725 = vmatpush1.msra.mxu0 0.0
    %1726 = vmatprep.subr.mxu0 0.0
    %1727 = vmatpush1.msra.mxu0 0.0
    %1728 = vmatprep.subr.mxu0 0.0
    %1729 = vmatpush1.msra.mxu0 0.0
    %1730 = vmatprep.subr.mxu0 0.0
    %1731 = vmatpush1.msra.mxu0 0.0
    %1732 = vmatprep.subr.mxu0 0.0
    %1733 = vmatpush1.msra.mxu0 0.0
    %1734 = vmatprep.subr.mxu0 0.0
    %1735 = vmatpush1.msra.mxu0 0.0
    %1736 = vmatprep.subr.mxu0 0.0
    %1737 = vmatpush1.msra.mxu0 0.0
    %1738 = vmatprep.subr.mxu0 0.0
    %1739 = vmatpush1.msra.mxu0 0.0
    %1740 = vmatprep.subr.mxu0 0.0
    %1741 = vmatpush1.msra.mxu0 0.0
    %1742 = vmatprep.subr.mxu0 0.0
    %1743 = vmatpush1.msra.mxu0 0.0
    %1744 = vmatprep.subr.mxu0 0.0
    %1745 = vmatpush1.msra.mxu0 0.0
    %1746 = vmatprep.subr.mxu0 0.0
    %1747 = vmatpush1.msra.mxu0 0.0
    %1748 = vmatprep.subr.mxu0 0.0
    %1749 = vmatpush1.msra.mxu0 0.0
    %1750 = vmatprep.subr.mxu0 0.0
    %1751 = vmatpush1.msra.mxu0 0.0
    %1752 = vmatprep.subr.mxu0 0.0
    %1753 = vmatpush1.msra.mxu0 0.0
    %1754 = vmatprep.subr.mxu0 0.0
    %1755 = vmatpush1.msra.mxu0 0.0
    %1756 = vmatprep.subr.mxu0 0.0
    %1757 = vmatpush1.msra.mxu0 0.0
    %1758 = vmatprep.subr.mxu0 0.0
    %1759 = vmatpush1.msra.mxu0 0.0
    %1760 = vmatprep.subr.mxu0 0.0
    %1761 = vmatpush1.msra.mxu0 0.0
    %1762 = vmatprep.subr.mxu0 0.0
    %1763 = vmatpush1.msra.mxu0 0.0
    %1764 = vmatprep.subr.mxu0 0.0
    %1765 = vmatpush1.msra.mxu0 0.0
    %1766 = vmatprep.subr.mxu0 0.0
    %1767 = vmatpush1.msra.mxu0 0.0
    %1768 = vmatprep.subr.mxu0 0.0
    %1769 = vmatpush1.msra.mxu0 0.0
    %1770 = vmatprep.subr.mxu0 0.0
    %1771 = vmatpush1.msra.mxu0 0.0
    %1772 = vmatprep.subr.mxu0 0.0
    %1773 = vmatpush1.msra.mxu0 0.0
    %1774 = vmatprep.mubr.f32.mxu0 0.0
    %v1775 = vand.u32 %v1405, 4294901760
    %1776 = vmatmul.mubr.f32.gmra.mrb[0].mxu0 %v1775
    %v1777 = vpop.f32.mrb[0].mxu0
    %v1778 = vadd.f32 %v1704, %v1777
    %v1779 = vpop.f32.mrb[0].mxu0
    %1780 = vdwg.mxu0
    %1781 = vmatprep.subr.mxu0 0.0
    %v1782 = vand.u32 %v30, 4294901760
    %1783 = vmatpush1.msra.mxu0 %v1782
    %1784 = vmatprep.subr.mxu0 0.0
    %1785 = vmatpush1.msra.mxu0 0.0
    %1786 = vmatprep.subr.mxu0 0.0
    %1787 = vmatpush1.msra.mxu0 0.0
    %1788 = vmatprep.subr.mxu0 0.0
    %1789 = vmatpush1.msra.mxu0 0.0
    %1790 = vmatprep.subr.mxu0 0.0
    %1791 = vmatpush1.msra.mxu0 0.0
    %1792 = vmatprep.subr.mxu0 0.0
    %1793 = vmatpush1.msra.mxu0 0.0
    %1794 = vmatprep.subr.mxu0 0.0
    %1795 = vmatpush1.msra.mxu0 0.0
    %1796 = vmatprep.subr.mxu0 0.0
    %1797 = vmatpush1.msra.mxu0 0.0
    %1798 = vmatprep.subr.mxu0 0.0
    %1799 = vmatpush1.msra.mxu0 0.0
    %1800 = vmatprep.subr.mxu0 0.0
    %1801 = vmatpush1.msra.mxu0 0.0
    %1802 = vmatprep.subr.mxu0 0.0
    %1803 = vmatpush1.msra.mxu0 0.0
    %1804 = vmatprep.subr.mxu0 0.0
    %1805 = vmatpush1.msra.mxu0 0.0
    %1806 = vmatprep.subr.mxu0 0.0
    %1807 = vmatpush1.msra.mxu0 0.0
    %1808 = vmatprep.subr.mxu0 0.0
    %1809 = vmatpush1.msra.mxu0 0.0
    %1810 = vmatprep.subr.mxu0 0.0
    %1811 = vmatpush1.msra.mxu0 0.0
    %1812 = vmatprep.subr.mxu0 0.0
    %1813 = vmatpush1.msra.mxu0 0.0
    %1814 = vmatprep.subr.mxu0 0.0
    %1815 = vmatpush1.msra.mxu0 0.0
    %1816 = vmatprep.subr.mxu0 0.0
    %1817 = vmatpush1.msra.mxu0 0.0
    %1818 = vmatprep.subr.mxu0 0.0
    %1819 = vmatpush1.msra.mxu0 0.0
    %1820 = vmatprep.subr.mxu0 0.0
    %1821 = vmatpush1.msra.mxu0 0.0
    %1822 = vmatprep.subr.mxu0 0.0
    %1823 = vmatpush1.msra.mxu0 0.0
    %1824 = vmatprep.subr.mxu0 0.0
    %1825 = vmatpush1.msra.mxu0 0.0
    %1826 = vmatprep.subr.mxu0 0.0
    %1827 = vmatpush1.msra.mxu0 0.0
    %1828 = vmatprep.subr.mxu0 0.0
    %1829 = vmatpush1.msra.mxu0 0.0
    %1830 = vmatprep.subr.mxu0 0.0
    %1831 = vmatpush1.msra.mxu0 0.0
    %1832 = vmatprep.subr.mxu0 0.0
    %1833 = vmatpush1.msra.mxu0 0.0
    %1834 = vmatprep.subr.mxu0 0.0
    %1835 = vmatpush1.msra.mxu0 0.0
    %1836 = vmatprep.subr.mxu0 0.0
    %1837 = vmatpush1.msra.mxu0 0.0
    %1838 = vmatprep.subr.mxu0 0.0
    %1839 = vmatpush1.msra.mxu0 0.0
    %1840 = vmatprep.subr.mxu0 0.0
    %1841 = vmatpush1.msra.mxu0 0.0
    %1842 = vmatprep.subr.mxu0 0.0
    %1843 = vmatpush1.msra.mxu0 0.0
    %1844 = vmatprep.subr.mxu0 0.0
    %1845 = vmatpush1.msra.mxu0 0.0
    %1846 = vmatprep.mubr.f32.mxu0 0.0
    %v1847 = vand.u32 %v1405, 4294901760
    %1848 = vmatmul.mubr.f32.gmra.mrb[0].mxu0 %v1847
    %v1849 = vpop.f32.mrb[0].mxu0
    %v1850 = vadd.f32 %v1778, %v1849
    %v1851 = vpop.f32.mrb[0].mxu0
    %1852 = vdwg.mxu0
    %vm1853 = vcmask 253952
    %1854 = vst.msk [vmem:[#allocation5] sm:$0x1] %vm1853, %v1401
    %1855 = vst.msk [vmem:[#allocation5 + $0x1] sm:$0x1] %vm1853, %v1850
    // Predicated region
    $region18: #{tpu_custom_call.1} parent=1 // pred_check
      _
    $region19: #{tpu_custom_call.1} parent=1 // pred_check_branch
      %1857 = sbr.rel (0) target = $region21
    $region20: #{tpu_custom_call.1} parent=1 // pred_region
      %s1859 = ssub.s32 32, 32
      %1860 = vsyncadd [#allocation4], %s1859
      %s1861 = sshll.u32 [#allocation5], 4
      %s1862 = int_to_ptr.vmem [resolvable:$true] %s1861
      %1867 = dma.vmem_to_hbm [thread:$0]  %s1862, 32, %s3, [#allocation4], 16, 16, 1
    $region21: #{tpu_custom_call.1} parent=1 // pred_fallthru
      _
    // Predicated region
    $region22: #{tpu_custom_call.1} parent=1 // pred_check
      _
    $region23: #{tpu_custom_call.1} parent=1 // pred_check_branch
      %1869 = sbr.rel (0) target = $region25
    $region24: #{tpu_custom_call.1} parent=1 // pred_region
      %1870 = dma.done [#allocation4], 32
    $region25: #{tpu_custom_call.1} parent=1 // pred_fallthru
      _
    %1871 = vsyncpa [#allocation3], 1
    %1872 = vsyncpa [#allocation4], 1

// kernel: tpu_custom_call.1
$region0: #{tpu_custom_call.1}
  #allocation0 [shape = 'u32[]', space=smem, size = 0x4, offset = 0x4, fixed_abs, tag = 'smem constant byte address 0x4 - core index']
  #allocation1 [shape = 'u32[144,128]{1,0:T(1,128)}', space=vmem, size = 0x12000, scoped, tag = 'internal scratch']
  %s0 = inlined_call_operand.hbm [shape: f32[2,8,32], index: 0, kind: input, shape index: {}]
  %s1 = inlined_call_operand.vmem [shape: f32[1,32], index: 1, kind: input, shape index: {}]
  %s2 = inlined_call_operand.vmem [shape: f32[1,8], index: 2, kind: input, shape index: {}]
  %s3 = inlined_call_operand.hbm [shape: f32[2,32], index: 3, kind: output, shape index: {}]
  %s4 = sld [smem:[#allocation0]]
  $region26: #{tpu_custom_call.1} parent=0
    _
  %s6 = ssub.s32 1, %s4
  %s7 = scalar_select 0, %s6, %s4
  $region1: #{tpu_custom_call.1} parent=0
    #allocation2 [shape = 'u8[8192]{0}', space=vmem, size = 0x2000, scoped, tag = 'input window, operand 0, single buffered']
    #allocation3 [shape = 's32[1]{0}', space=sflag, size = 0x4, scoped, tag = 'scoped memory for tpu_custom_call.1']
    #allocation4 [shape = 's32[1]{0}', space=sflag, size = 0x4, scoped, tag = 'scoped memory for tpu_custom_call.1']
    #allocation5 [shape = 'u8[1024]{0}', space=vmem, size = 0x400, scoped, tag = 'output window, operand 0, single buffered']
    %8 = vsyncpa [#allocation3], 0
    %9 = vsyncpa [#allocation4], 0
    // Predicated region
    $region2: #{tpu_custom_call.1} parent=1 // pred_check
      _
    $region3: #{tpu_custom_call.1} parent=1 // pred_check_branch
      %11 = sbr.rel (0) target = $region5
    $region4: #{tpu_custom_call.1} parent=1 // pred_region
      %s13 = ssub.s32 256, 256
      %14 = vsyncadd [#allocation3], %s13
      %s15 = sshll.u32 [#allocation2], 4
      %s16 = int_to_ptr.vmem [resolvable:$true] %s15
      %21 = dma.hbm_to_vmem [thread:$0]  %s0, 256, %s16, [#allocation3], 128, 128, 8
    $region5: #{tpu_custom_call.1} parent=1 // pred_fallthru
      _
    // Predicated region
    $region6: #{tpu_custom_call.1} parent=1 // pred_check
      _
    $region7: #{tpu_custom_call.1} parent=1 // pred_check_branch
      %23 = sbr.rel (0) target = $region9
    $region8: #{tpu_custom_call.1} parent=1 // pred_region
      _
    $region9: #{tpu_custom_call.1} parent=1 // pred_fallthru
      _
    // Predicated region
    $region10: #{tpu_custom_call.1} parent=1 // pred_check
      _
    $region11: #{tpu_custom_call.1} parent=1 // pred_check_branch
      %25 = sbr.rel (0) target = $region13
    $region12: #{tpu_custom_call.1} parent=1 // pred_region
      _
    $region13: #{tpu_custom_call.1} parent=1 // pred_fallthru
      _
    // Predicated region
    $region14: #{tpu_custom_call.1} parent=1 // pred_check
      _
    $region15: #{tpu_custom_call.1} parent=1 // pred_check_branch
      %27 = sbr.rel (0) target = $region17
    $region16: #{tpu_custom_call.1} parent=1 // pred_region
      %28 = dma.done [#allocation3], 256
    $region17: #{tpu_custom_call.1} parent=1 // pred_fallthru
      _
    %v29 = vld [vmem:[#allocation2] sm:$0xff]
    %v30 = vld [vmem:[#allocation2 + $0x8] sm:$0xff]
    %v31 = vld [vmem:[%s1] sm:$0x1]
    %v32 = vld [vmem:[%s2] sm:$0x1]
    %v34 = vlaneseq
    %v35 = vshrl.u32 %v34, 7
    %v36 = vsub.s32 0, %v35
    %v37 = vrot.slane %v31, %v36
    %v39 = vmul.f32 %v29, %v37
    %v40 = vmul.f32 %v30, %v37
    %vm41 = vcmask 261120
    %v42 = vsel %vm41, %v39, 0.0
    %43 = vadd.xlane.f32.xlu0 %v42
    %v44 = vpop.xlane.xlu0 %43
    %v45 = vsel %vm41, %v40, 0.0
    %46 = vadd.xlane.f32.xlu0 %v45
    %v47 = vpop.xlane.xlu0 %46
    %v49 = vlaneseq
    %v50 = vshrl.u32 %v49, 7
    %v51 = vsub.s32 0, %v50
    %v52 = vrot.slane %v32, %v51
    %54 = vbcast.lane.b32.xlu0 %v52, 256
    %v55 = vpop.permute.xlu0 %54
    %v57 = vadd.f32 %v44, %v55
    %v58 = vadd.f32 %v47, %v55
    %v59 = vtanh.pop %v57
    %v60 = vtanh.pop %v58
    %v61 = vmul.f32 %v59, 1.442695
    %v62 = vpow.pop %v61
    %v63 = vmul.f32 %v60, 1.442695
    %v64 = vpow.pop %v63
    %67 = vset.pattern.permute.xlu0 0
    %68 = vperm.xlu0 %67, %v62
    %v69 = vpop.permute.xlu0 %68
    %70 = vset.pattern.permute.xlu0 0
    %71 = vperm.xlu0 %70, %v64
    %v72 = vpop.permute.xlu0 %71
    %v73 = vlaneseq
    %v74 = vand.u32 %v73, 127
    %v75 = vlaneseq
    %v76 = vshrl.u32 %v75, 7
    %v77 = vsub.s32 %v74, %v76
    %v78 = vrot.slane %v69, %v77
    %v79 = vlaneseq
    %v80 = vshrl.u32 %v79, 7
    %v81 = vsub.s32 %v74, %v80
    %v82 = vrot.slane %v72, %v81
    %vm83 = vcmask 1041409
    %v84 = vsel %vm83, %v82, %v78
    %vm86 = vcmask 58368
    %v87 = vsel %vm86, %v84, 0.0
    %88 = vadd.xlane.f32.xlu0 %v87
    %v89 = vpop.xlane.xlu0 %88
    %v91 = vlaneseq
    %v92 = vshrl.u32 %v91, 7
    %v93 = vsub.s32 0, %v92
    %v94 = vrot.slane %v89, %v93
    %v95 = vlaneseq
    %v96 = vshrl.u32 %v95, 7
    %v97 = vsub.s32 1, %v96
    %v98 = vrot.slane %v89, %v97
    %v101 = vrcp.pop %v94
    %v102 = vmul.f32 %v62, %v101
    %v103 = vrcp.pop %v98
    %v104 = vmul.f32 %v64, %v103
    %v105 = vadd.f32 %v102, 1e-10
    %v106 = vadd.f32 %v104, 1e-10
    %108 = vset.pattern.permute.xlu0 0
    %109 = vperm.xlu0 %108, %v105
    %v110 = vpop.permute.xlu0 %109
    %113 = vset.pattern.permute.xlu0 0
    %114 = vperm.xlu0 %113, %v106
    %v115 = vpop.permute.xlu0 %114
    %v117 = vmul.f32 %v29, %v110
    %v118 = vmul.f32 %v30, %v115
    %v119 = vsel %vm41, %v117, 0.0
    %v120 = vrot.slane %v119, 4
    %v121 = vadd.f32 %v119, %v120
    %v122 = vrot.slane %v121, 2
    %v123 = vadd.f32 %v121, %v122
    %v124 = vrot.slane %v123, 1
    %v125 = vadd.f32 %v123, %v124
    %v126 = vsel %vm41, %v118, 0.0
    %v127 = vrot.slane %v126, 4
    %v128 = vadd.f32 %v126, %v127
    %v129 = vrot.slane %v128, 2
    %v130 = vadd.f32 %v128, %v129
    %v131 = vrot.slane %v130, 1
    %v132 = vadd.f32 %v130, %v131
    %v135 = vsel %vm83, %v132, %v125
    %vm137 = vcmask 254976
    %138 = vst.msk [vmem:[#allocation5] sm:$0x3] %vm137, %v135
    // Predicated region
    $region18: #{tpu_custom_call.1} parent=1 // pred_check
      _
    $region19: #{tpu_custom_call.1} parent=1 // pred_check_branch
      %140 = sbr.rel (0) target = $region21
    $region20: #{tpu_custom_call.1} parent=1 // pred_region
      %s142 = ssub.s32 32, 32
      %143 = vsyncadd [#allocation4], %s142
      %s145 = sshll.u32 [#allocation5], 4
      %s146 = int_to_ptr.vmem [resolvable:$true] %s145
      %148 = dma.vmem_to_hbm [thread:$0]  %s146, 32, %s3, [#allocation4]
    $region21: #{tpu_custom_call.1} parent=1 // pred_fallthru
      _
    // Predicated region
    $region22: #{tpu_custom_call.1} parent=1 // pred_check
      _
    $region23: #{tpu_custom_call.1} parent=1 // pred_check_branch
      %150 = sbr.rel (0) target = $region25
    $region24: #{tpu_custom_call.1} parent=1 // pred_region
      %151 = dma.done [#allocation4], 32
    $region25: #{tpu_custom_call.1} parent=1 // pred_fallthru
      _
    %152 = vsyncpa [#allocation3], 1
    %153 = vsyncpa [#allocation4], 1

</llo_original>
